<compile_context>
chip_gen: v6e
topology: v6e:2x2x1
jax: 0.10.0
libtpu: 0.0.40
codegen_flags: <defaults>
</compile_context>

<pallas_src>
import jax
import jax.numpy as jnp
from jax.experimental import pallas as pl
from jax.experimental.pallas import tpu as pltpu

LANE = 128


# ----------------------------------------------------------------------------
# Fused kernel: stem -> enc -> dec(+skip) -> head, all inside one row tile
# ----------------------------------------------------------------------------
def _fused_backbone_kernel(x_ref, w0_ref, b0_ref, w1_ref, b1_ref,
                           w2_ref, b2_ref, w3_ref, b3_ref, o_ref):
    x = x_ref[...]                       # [tm, C_in]  (compute dtype, e.g. bf16)
    cdt = x.dtype

    # stem: relu(x @ w0 + b0)            -> h0 [tm, H]  (f32)
    h0 = jnp.dot(x, w0_ref[...], preferred_element_type=jnp.float32) + b0_ref[...]
    h0 = jnp.maximum(h0, 0.0)

    # encoder: relu(h0 @ w1 + b1)        -> h1 [tm, 2H]
    h1 = jnp.dot(h0.astype(cdt), w1_ref[...],
                 preferred_element_type=jnp.float32) + b1_ref[...]
    h1 = jnp.maximum(h1, 0.0)

    # decoder: relu(h1 @ w2 + b2 + skip) -> h2 [tm, H]
    # (standard UNet decoder ordering: skip added *before* the non-linearity)
    h2 = jnp.dot(h1.astype(cdt), w2_ref[...],
                 preferred_element_type=jnp.float32) + b2_ref[...] + h0
    h2 = jnp.maximum(h2, 0.0)

    # head: h2 @ w3 + b3                 -> out [tm, C_pad] (C_out zero-padded to 128)
    out = jnp.dot(h2.astype(cdt), w3_ref[...],
                  preferred_element_type=jnp.float32) + b3_ref[...]
    o_ref[...] = out.astype(o_ref.dtype)


def fused_backbone(feat, params, *, tm=512, compute_dtype=jnp.bfloat16):
    """Runs the whole 4-layer backbone in one pallas_call. feat: [N, C_in] f32."""
    N, C_in = feat.shape
    w0, b0 = params["stem"]
    w1, b1 = params["enc"]
    w2, b2 = params["dec"]
    w3, b3 = params["head"]
    H, H2, C_out = w0.shape[1], w1.shape[1], w3.shape[1]
    C_pad = pl.cdiv(C_out, LANE) * LANE

    # bf16 for everything that streams through the MXU / HBM; biases stay f32
    # (bias add / skip / ReLU run in f32 inside the kernel).
    x = feat.astype(compute_dtype)
    w0c = w0.astype(compute_dtype)
    w1c = w1.astype(compute_dtype)
    w2c = w2.astype(compute_dtype)
    # Pad head weight/bias so the single HBM store is 128-lane dense.
    w3c = jnp.zeros((H, C_pad), compute_dtype).at[:, :C_out].set(
        w3.astype(compute_dtype))
    b3p = jnp.zeros((1, C_pad), jnp.float32).at[:, :C_out].set(b3)
    b0r = b0.reshape(1, H)
    b1r = b1.reshape(1, H2)
    b2r = b2.reshape(1, H)

    # Arbitrary voxel counts: pad rows up to a multiple of tm, slice afterwards.
    n_blocks = pl.cdiv(N, tm)
    n_pad = n_blocks * tm
    if n_pad != N:
        x = jnp.pad(x, ((0, n_pad - N), (0, 0)))

    out = pl.pallas_call(
        _fused_backbone_kernel,
        out_shape=jax.ShapeDtypeStruct((n_pad, C_pad), compute_dtype),
        grid_spec=pltpu.PrefetchScalarGridSpec(
            num_scalar_prefetch=0,
            grid=(n_blocks,),
            in_specs=[
                pl.BlockSpec((tm, C_in), lambda i: (i, 0)),    # voxel feats (streamed)
                pl.BlockSpec((C_in, H), lambda i: (0, 0)),     # w0 (resident)
                pl.BlockSpec((1, H), lambda i: (0, 0)),        # b0
                pl.BlockSpec((H, H2), lambda i: (0, 0)),       # w1
                pl.BlockSpec((1, H2), lambda i: (0, 0)),       # b1
                pl.BlockSpec((H2, H), lambda i: (0, 0)),       # w2
                pl.BlockSpec((1, H), lambda i: (0, 0)),        # b2
                pl.BlockSpec((H, C_pad), lambda i: (0, 0)),    # w3 (lane-padded)
                pl.BlockSpec((1, C_pad), lambda i: (0, 0)),    # b3 (lane-padded)
            ],
            out_specs=pl.BlockSpec((tm, C_pad), lambda i: (i, 0)),
        ),
        compiler_params=pltpu.CompilerParams(
            dimension_semantics=("parallel",)),   # megacore sharding on v7x
    )(x, w0c, b0r, w1c, b1r, w2c, b2r, w3c, b3p)

    # Drop row padding and lane padding, return f32 like the PyTorch module.
    return out[:N, :C_out].astype(jnp.float32)


# ----------------------------------------------------------------------------
# Synthetic sparse-UNet backbone parameters (deterministic init)
# ----------------------------------------------------------------------------
def init_backbone_params(c_in=16, hidden=32, c_out=64):
    key = jax.random.PRNGKey(0)
    ks = jax.random.split(key, 8)

    def lin(kw, kb, fan_in, fan_out):
        scale = 1.0 / jnp.sqrt(jnp.float32(fan_in))
        w = jax.random.uniform(kw, (fan_in, fan_out), jnp.float32, -scale, scale)
        b = jax.random.uniform(kb, (fan_out,), jnp.float32, -scale, scale)
        return w, b

    params = {
        "stem": lin(ks[0], ks[1], c_in, hidden),
        "enc":  lin(ks[2], ks[3], hidden, 2 * hidden),
        "dec":  lin(ks[4], ks[5], 2 * hidden, hidden),
        "head": lin(ks[6], ks[7], hidden, c_out),
    }
    # BatchNorm layers of the original backbone are assumed folded into the
    # linear weights/biases at export time (standard for ONNX export).
    return params


# ----------------------------------------------------------------------------
# Forward pass mirroring segment_backbone.forward(feat, coords)
# ----------------------------------------------------------------------------
def segment_backbone_forward(params, feat, coords):
    # voxel_info = {'voxel_coors': coords, 'voxel_feats': feat}
    assert coords.shape[0] == feat.shape[0] and coords.shape[1] == 4
    assert coords.dtype == jnp.int32
    return fused_backbone(feat, params)


if __name__ == "__main__":
    # N_VOX deliberately NOT a multiple of the row tile to exercise the
    # cdiv + padding tail path.
    N_VOX, C_IN, HIDDEN, C_OUT = 200, 16, 32, 64

    key = jax.random.PRNGKey(0)
    kf, kc = jax.random.split(key)
    feat = jax.random.normal(kf, (N_VOX, C_IN), dtype=jnp.float32)
    # coords: [batch_idx, z, y, x] per voxel (int32), as produced by voxelization
    coords = jax.random.randint(kc, (N_VOX, 4), 0, 16, dtype=jnp.int32)
    coords = coords.at[:, 0].set(coords[:, 0] % 2)  # batch index in {0, 1}

    params = init_backbone_params(C_IN, HIDDEN, C_OUT)

    out = segment_backbone_forward(params, feat, coords)
    out = jax.block_until_ready(out)

    assert out.shape == (N_VOX, C_OUT)
    assert jnp.all(jnp.isfinite(out))

    # Cross-check against a pure-JAX reference of the same fused math (bf16
    # streams, f32 accumulation) to validate the Pallas lowering.
    def ref(feat, params):
        cd = jnp.bfloat16
        (w0, b0), (w1, b1) = params["stem"], params["enc"]
        (w2, b2), (w3, b3) = params["dec"], params["head"]
        x = feat.astype(cd)
        h0 = jnp.maximum(jnp.dot(x, w0.astype(cd),
                                 preferred_element_type=jnp.float32) + b0, 0.0)
        h1 = jnp.maximum(jnp.dot(h0.astype(cd), w1.astype(cd),
                                 preferred_element_type=jnp.float32) + b1, 0.0)
        h2 = jnp.maximum(jnp.dot(h1.astype(cd), w2.astype(cd),
                                 preferred_element_type=jnp.float32) + b2 + h0, 0.0)
        o = jnp.dot(h2.astype(cd), w3.astype(cd),
                    preferred_element_type=jnp.float32) + b3
        return o.astype(cd).astype(jnp.float32)

    ref_out = jax.block_until_ready(ref(feat, params))
    assert jnp.allclose(out, ref_out, atol=2e-2, rtol=2e-2)

    print("KERNEL_OK")
</pallas_src>

<mosaic_0001>
module attributes {stable_mosaic.version = 11 : i64} {
  func.func @_fused_backbone_kernel(%arg0: i32, %arg1: memref<512x16xbf16, #tpu.memory_space<vmem>>, %arg2: memref<16x32xbf16, #tpu.memory_space<vmem>>, %arg3: memref<1x32xf32, #tpu.memory_space<vmem>>, %arg4: memref<32x64xbf16, #tpu.memory_space<vmem>>, %arg5: memref<1x64xf32, #tpu.memory_space<vmem>>, %arg6: memref<64x32xbf16, #tpu.memory_space<vmem>>, %arg7: memref<1x32xf32, #tpu.memory_space<vmem>>, %arg8: memref<32x128xbf16, #tpu.memory_space<vmem>>, %arg9: memref<1x128xf32, #tpu.memory_space<vmem>>, %arg10: memref<512x128xbf16, #tpu.memory_space<vmem>>) attributes {dimension_semantics = [#tpu.dimension_semantics<parallel>], iteration_bounds = array<i64: 1>, scalar_prefetch = 0 : i64, scratch_operands = 0 : i64, tpu.core_type = #tpu.core_type<tc>, window_params = [{transform_indices = @transform_0, window_bounds = array<i64: 512, 16>}, {pipeline_mode = #tpu.pipeline_mode<synchronous>, transform_indices = @transform_1, window_bounds = array<i64: 16, 32>}, {pipeline_mode = #tpu.pipeline_mode<synchronous>, transform_indices = @transform_2, window_bounds = array<i64: 1, 32>}, {pipeline_mode = #tpu.pipeline_mode<synchronous>, transform_indices = @transform_3, window_bounds = array<i64: 32, 64>}, {pipeline_mode = #tpu.pipeline_mode<synchronous>, transform_indices = @transform_4, window_bounds = array<i64: 1, 64>}, {pipeline_mode = #tpu.pipeline_mode<synchronous>, transform_indices = @transform_5, window_bounds = array<i64: 64, 32>}, {pipeline_mode = #tpu.pipeline_mode<synchronous>, transform_indices = @transform_6, window_bounds = array<i64: 1, 32>}, {pipeline_mode = #tpu.pipeline_mode<synchronous>, transform_indices = @transform_7, window_bounds = array<i64: 32, 128>}, {pipeline_mode = #tpu.pipeline_mode<synchronous>, transform_indices = @transform_8, window_bounds = array<i64: 1, 128>}, {transform_indices = @transform_9, window_bounds = array<i64: 512, 128>}]} {
    %c0 = arith.constant 0 : index
    %c0_0 = arith.constant 0 : index
    %0 = vector.load %arg1[%c0, %c0_0] : memref<512x16xbf16, #tpu.memory_space<vmem>>, vector<512x16xbf16>
    %c0_1 = arith.constant 0 : index
    %c0_2 = arith.constant 0 : index
    %1 = vector.load %arg2[%c0_1, %c0_2] : memref<16x32xbf16, #tpu.memory_space<vmem>>, vector<16x32xbf16>
    %cst = arith.constant dense<0.000000e+00> : vector<512x32xf32>
    %2 = tpu.matmul %0, %1, %cst {dimension_numbers = #tpu.dot_dimension_numbers<[1], [0], [0], [1], [0, 0, 1, 1], [], []>} : vector<512x16xbf16>, vector<16x32xbf16>, vector<512x32xf32> -> vector<512x32xf32>
    %c0_3 = arith.constant 0 : index
    %c0_4 = arith.constant 0 : index
    %3 = vector.load %arg3[%c0_3, %c0_4] : memref<1x32xf32, #tpu.memory_space<vmem>>, vector<1x32xf32>
    %4 = vector.broadcast %3 : vector<1x32xf32> to vector<512x32xf32>
    %5 = arith.addf %2, %4 : vector<512x32xf32>
    %cst_5 = arith.constant 0.000000e+00 : f32
    %6 = vector.broadcast %cst_5 : f32 to vector<512x32xf32>
    %7 = arith.maximumf %5, %6 : vector<512x32xf32>
    %8 = arith.truncf %7 : vector<512x32xf32> to vector<512x32xbf16>
    %c0_6 = arith.constant 0 : index
    %c0_7 = arith.constant 0 : index
    %9 = vector.load %arg4[%c0_6, %c0_7] : memref<32x64xbf16, #tpu.memory_space<vmem>>, vector<32x64xbf16>
    %cst_8 = arith.constant dense<0.000000e+00> : vector<512x64xf32>
    %10 = tpu.matmul %8, %9, %cst_8 {dimension_numbers = #tpu.dot_dimension_numbers<[1], [0], [0], [1], [0, 0, 1, 1], [], []>} : vector<512x32xbf16>, vector<32x64xbf16>, vector<512x64xf32> -> vector<512x64xf32>
    %c0_9 = arith.constant 0 : index
    %c0_10 = arith.constant 0 : index
    %11 = vector.load %arg5[%c0_9, %c0_10] : memref<1x64xf32, #tpu.memory_space<vmem>>, vector<1x64xf32>
    %12 = vector.broadcast %11 : vector<1x64xf32> to vector<512x64xf32>
    %13 = arith.addf %10, %12 : vector<512x64xf32>
    %cst_11 = arith.constant 0.000000e+00 : f32
    %14 = vector.broadcast %cst_11 : f32 to vector<512x64xf32>
    %15 = arith.maximumf %13, %14 : vector<512x64xf32>
    %16 = arith.truncf %15 : vector<512x64xf32> to vector<512x64xbf16>
    %c0_12 = arith.constant 0 : index
    %c0_13 = arith.constant 0 : index
    %17 = vector.load %arg6[%c0_12, %c0_13] : memref<64x32xbf16, #tpu.memory_space<vmem>>, vector<64x32xbf16>
    %cst_14 = arith.constant dense<0.000000e+00> : vector<512x32xf32>
    %18 = tpu.matmul %16, %17, %cst_14 {dimension_numbers = #tpu.dot_dimension_numbers<[1], [0], [0], [1], [0, 0, 1, 1], [], []>} : vector<512x64xbf16>, vector<64x32xbf16>, vector<512x32xf32> -> vector<512x32xf32>
    %c0_15 = arith.constant 0 : index
    %c0_16 = arith.constant 0 : index
    %19 = vector.load %arg7[%c0_15, %c0_16] : memref<1x32xf32, #tpu.memory_space<vmem>>, vector<1x32xf32>
    %20 = vector.broadcast %19 : vector<1x32xf32> to vector<512x32xf32>
    %21 = arith.addf %18, %20 : vector<512x32xf32>
    %22 = arith.addf %21, %7 : vector<512x32xf32>
    %cst_17 = arith.constant 0.000000e+00 : f32
    %23 = vector.broadcast %cst_17 : f32 to vector<512x32xf32>
    %24 = arith.maximumf %22, %23 : vector<512x32xf32>
    %25 = arith.truncf %24 : vector<512x32xf32> to vector<512x32xbf16>
    %c0_18 = arith.constant 0 : index
    %c0_19 = arith.constant 0 : index
    %26 = vector.load %arg8[%c0_18, %c0_19] : memref<32x128xbf16, #tpu.memory_space<vmem>>, vector<32x128xbf16>
    %cst_20 = arith.constant dense<0.000000e+00> : vector<512x128xf32>
    %27 = tpu.matmul %25, %26, %cst_20 {dimension_numbers = #tpu.dot_dimension_numbers<[1], [0], [0], [1], [0, 0, 1, 1], [], []>} : vector<512x32xbf16>, vector<32x128xbf16>, vector<512x128xf32> -> vector<512x128xf32>
    %c0_21 = arith.constant 0 : index
    %c0_22 = arith.constant 0 : index
    %28 = vector.load %arg9[%c0_21, %c0_22] : memref<1x128xf32, #tpu.memory_space<vmem>>, vector<1x128xf32>
    %29 = vector.broadcast %28 : vector<1x128xf32> to vector<512x128xf32>
    %30 = arith.addf %27, %29 : vector<512x128xf32>
    %31 = arith.truncf %30 : vector<512x128xf32> to vector<512x128xbf16>
    %c0_23 = arith.constant 0 : index
    %c0_24 = arith.constant 0 : index
    %32 = vector.load %arg10[%c0_23, %c0_24] : memref<512x128xbf16, #tpu.memory_space<vmem>>, vector<512x128xbf16>
    tpu.vector_store %arg10[%c0_23, %c0_24], %31 {strides = array<i32>} : memref<512x128xbf16, #tpu.memory_space<vmem>>, vector<512x128xbf16>,
    return
  }
  func.func @transform_0(%arg0: i32) -> (i32, i32) {
    %c0_i32 = arith.constant 0 : i32
    %c0_i32_0 = arith.constant 0 : i32
    return %arg0, %c0_i32 : i32, i32
  }
  func.func @transform_1(%arg0: i32) -> (i32, i32) {
    %c0_i32 = arith.constant 0 : i32
    %c0_i32_0 = arith.constant 0 : i32
    %c0_i32_1 = arith.constant 0 : i32
    return %c0_i32, %c0_i32_0 : i32, i32
  }
  func.func @transform_2(%arg0: i32) -> (i32, i32) {
    %c0_i32 = arith.constant 0 : i32
    %c0_i32_0 = arith.constant 0 : i32
    %c0_i32_1 = arith.constant 0 : i32
    return %c0_i32, %c0_i32_0 : i32, i32
  }
  func.func @transform_3(%arg0: i32) -> (i32, i32) {
    %c0_i32 = arith.constant 0 : i32
    %c0_i32_0 = arith.constant 0 : i32
    %c0_i32_1 = arith.constant 0 : i32
    return %c0_i32, %c0_i32_0 : i32, i32
  }
  func.func @transform_4(%arg0: i32) -> (i32, i32) {
    %c0_i32 = arith.constant 0 : i32
    %c0_i32_0 = arith.constant 0 : i32
    %c0_i32_1 = arith.constant 0 : i32
    return %c0_i32, %c0_i32_0 : i32, i32
  }
  func.func @transform_5(%arg0: i32) -> (i32, i32) {
    %c0_i32 = arith.constant 0 : i32
    %c0_i32_0 = arith.constant 0 : i32
    %c0_i32_1 = arith.constant 0 : i32
    return %c0_i32, %c0_i32_0 : i32, i32
  }
  func.func @transform_6(%arg0: i32) -> (i32, i32) {
    %c0_i32 = arith.constant 0 : i32
    %c0_i32_0 = arith.constant 0 : i32
    %c0_i32_1 = arith.constant 0 : i32
    return %c0_i32, %c0_i32_0 : i32, i32
  }
  func.func @transform_7(%arg0: i32) -> (i32, i32) {
    %c0_i32 = arith.constant 0 : i32
    %c0_i32_0 = arith.constant 0 : i32
    %c0_i32_1 = arith.constant 0 : i32
    return %c0_i32, %c0_i32_0 : i32, i32
  }
  func.func @transform_8(%arg0: i32) -> (i32, i32) {
    %c0_i32 = arith.constant 0 : i32
    %c0_i32_0 = arith.constant 0 : i32
    %c0_i32_1 = arith.constant 0 : i32
    return %c0_i32, %c0_i32_0 : i32, i32
  }
  func.func @transform_9(%arg0: i32) -> (i32, i32) {
    %c0_i32 = arith.constant 0 : i32
    %c0_i32_0 = arith.constant 0 : i32
    return %arg0, %c0_i32 : i32, i32
  }
}

</mosaic_0001>

<llo_original>
// kernel: tpu_custom_call.1
$region0: #{tpu_custom_call.1}
  #allocation0 [shape = 'u32[]', space=smem, size = 0x4, offset = 0x4, fixed_abs, tag = 'smem constant byte address 0x4 - core index']
  #allocation1 [shape = 'u32[144,128]{1,0:T(1,128)}', space=vmem, size = 0x12000, scoped, tag = 'internal scratch']
  %s0 = inlined_call_operand.vmem [shape: bf16[512,16], index: 0, kind: input, shape index: {}]
  %s1 = inlined_call_operand.vmem [shape: bf16[16,32], index: 1, kind: input, shape index: {}]
  %s2 = inlined_call_operand.vmem [shape: f32[1,32], index: 2, kind: input, shape index: {}]
  %s3 = inlined_call_operand.vmem [shape: bf16[32,64], index: 3, kind: input, shape index: {}]
  %s4 = inlined_call_operand.vmem [shape: f32[1,64], index: 4, kind: input, shape index: {}]
  %s5 = inlined_call_operand.vmem [shape: bf16[64,32], index: 5, kind: input, shape index: {}]
  %s6 = inlined_call_operand.vmem [shape: f32[1,32], index: 6, kind: input, shape index: {}]
  %s7 = inlined_call_operand.vmem [shape: bf16[32,128], index: 7, kind: input, shape index: {}]
  %s8 = inlined_call_operand.vmem [shape: f32[1,128], index: 8, kind: input, shape index: {}]
  %s9 = inlined_call_operand.hbm [shape: bf16[512,128], index: 9, kind: output, shape index: {}]
  %s10 = sld [smem:[#allocation0]]
  $region46: #{tpu_custom_call.1} parent=0
    _
  %s12 = ssub.s32 1, %s10
  %s13 = scalar_select 0, %s12, %s10
  $region1: #{tpu_custom_call.1} parent=0
    #allocation2 [shape = 'u8[131072]{0}', space=vmem, size = 0x20000, scoped, tag = 'output window, operand 0, single buffered']
    #allocation3 [shape = 's32[1]{0}', space=sflag, size = 0x4, scoped, tag = 'scoped memory for tpu_custom_call.1']
    %14 = vsyncpa [#allocation3], 0
    // Predicated region
    $region2: #{tpu_custom_call.1} parent=1 // pred_check
      _
    $region3: #{tpu_custom_call.1} parent=1 // pred_check_branch
      %16 = sbr.rel (0) target = $region5
    $region4: #{tpu_custom_call.1} parent=1 // pred_region
      _
    $region5: #{tpu_custom_call.1} parent=1 // pred_fallthru
      _
    // Predicated region
    $region6: #{tpu_custom_call.1} parent=1 // pred_check
      _
    $region7: #{tpu_custom_call.1} parent=1 // pred_check_branch
      %18 = sbr.rel (0) target = $region9
    $region8: #{tpu_custom_call.1} parent=1 // pred_region
      _
    $region9: #{tpu_custom_call.1} parent=1 // pred_fallthru
      _
    // Predicated region
    $region10: #{tpu_custom_call.1} parent=1 // pred_check
      _
    $region11: #{tpu_custom_call.1} parent=1 // pred_check_branch
      %20 = sbr.rel (0) target = $region13
    $region12: #{tpu_custom_call.1} parent=1 // pred_region
      _
    $region13: #{tpu_custom_call.1} parent=1 // pred_fallthru
      _
    // Predicated region
    $region14: #{tpu_custom_call.1} parent=1 // pred_check
      _
    $region15: #{tpu_custom_call.1} parent=1 // pred_check_branch
      %22 = sbr.rel (0) target = $region17
    $region16: #{tpu_custom_call.1} parent=1 // pred_region
      _
    $region17: #{tpu_custom_call.1} parent=1 // pred_fallthru
      _
    // Predicated region
    $region18: #{tpu_custom_call.1} parent=1 // pred_check
      _
    $region19: #{tpu_custom_call.1} parent=1 // pred_check_branch
      %24 = sbr.rel (0) target = $region21
    $region20: #{tpu_custom_call.1} parent=1 // pred_region
      _
    $region21: #{tpu_custom_call.1} parent=1 // pred_fallthru
      _
    // Predicated region
    $region22: #{tpu_custom_call.1} parent=1 // pred_check
      _
    $region23: #{tpu_custom_call.1} parent=1 // pred_check_branch
      %26 = sbr.rel (0) target = $region25
    $region24: #{tpu_custom_call.1} parent=1 // pred_region
      _
    $region25: #{tpu_custom_call.1} parent=1 // pred_fallthru
      _
    // Predicated region
    $region26: #{tpu_custom_call.1} parent=1 // pred_check
      _
    $region27: #{tpu_custom_call.1} parent=1 // pred_check_branch
      %28 = sbr.rel (0) target = $region29
    $region28: #{tpu_custom_call.1} parent=1 // pred_region
      _
    $region29: #{tpu_custom_call.1} parent=1 // pred_fallthru
      _
    // Predicated region
    $region30: #{tpu_custom_call.1} parent=1 // pred_check
      _
    $region31: #{tpu_custom_call.1} parent=1 // pred_check_branch
      %30 = sbr.rel (0) target = $region33
    $region32: #{tpu_custom_call.1} parent=1 // pred_region
      _
    $region33: #{tpu_custom_call.1} parent=1 // pred_fallthru
      _
    // Predicated region
    $region34: #{tpu_custom_call.1} parent=1 // pred_check
      _
    $region35: #{tpu_custom_call.1} parent=1 // pred_check_branch
      %32 = sbr.rel (0) target = $region37
    $region36: #{tpu_custom_call.1} parent=1 // pred_region
      _
    $region37: #{tpu_custom_call.1} parent=1 // pred_fallthru
      _
    %v34 = vld [vmem:[%s0] sm:$0xf]
    %v35 = vld [vmem:[%s0 + $0x4] sm:$0xf]
    %v36 = vld [vmem:[%s0 + $0x8] sm:$0xf]
    %v37 = vld [vmem:[%s0 + $0xc] sm:$0xf]
    %v38 = vld [vmem:[%s0 + $0x10] sm:$0xf]
    %v39 = vld [vmem:[%s0 + $0x14] sm:$0xf]
    %v40 = vld [vmem:[%s0 + $0x18] sm:$0xf]
    %v41 = vld [vmem:[%s0 + $0x1c] sm:$0xf]
    %v42 = vld [vmem:[%s0 + $0x20] sm:$0xf]
    %v43 = vld [vmem:[%s0 + $0x24] sm:$0xf]
    %v44 = vld [vmem:[%s0 + $0x28] sm:$0xf]
    %v45 = vld [vmem:[%s0 + $0x2c] sm:$0xf]
    %v46 = vld [vmem:[%s0 + $0x30] sm:$0xf]
    %v47 = vld [vmem:[%s0 + $0x34] sm:$0xf]
    %v48 = vld [vmem:[%s0 + $0x38] sm:$0xf]
    %v49 = vld [vmem:[%s0 + $0x3c] sm:$0xf]
    %v50 = vld [vmem:[%s0 + $0x40] sm:$0xf]
    %v51 = vld [vmem:[%s0 + $0x44] sm:$0xf]
    %v52 = vld [vmem:[%s0 + $0x48] sm:$0xf]
    %v53 = vld [vmem:[%s0 + $0x4c] sm:$0xf]
    %v54 = vld [vmem:[%s0 + $0x50] sm:$0xf]
    %v55 = vld [vmem:[%s0 + $0x54] sm:$0xf]
    %v56 = vld [vmem:[%s0 + $0x58] sm:$0xf]
    %v57 = vld [vmem:[%s0 + $0x5c] sm:$0xf]
    %v58 = vld [vmem:[%s0 + $0x60] sm:$0xf]
    %v59 = vld [vmem:[%s0 + $0x64] sm:$0xf]
    %v60 = vld [vmem:[%s0 + $0x68] sm:$0xf]
    %v61 = vld [vmem:[%s0 + $0x6c] sm:$0xf]
    %v62 = vld [vmem:[%s0 + $0x70] sm:$0xf]
    %v63 = vld [vmem:[%s0 + $0x74] sm:$0xf]
    %v64 = vld [vmem:[%s0 + $0x78] sm:$0xf]
    %v65 = vld [vmem:[%s0 + $0x7c] sm:$0xf]
    %v66 = vld [vmem:[%s0 + $0x80] sm:$0xf]
    %v67 = vld [vmem:[%s0 + $0x84] sm:$0xf]
    %v68 = vld [vmem:[%s0 + $0x88] sm:$0xf]
    %v69 = vld [vmem:[%s0 + $0x8c] sm:$0xf]
    %v70 = vld [vmem:[%s0 + $0x90] sm:$0xf]
    %v71 = vld [vmem:[%s0 + $0x94] sm:$0xf]
    %v72 = vld [vmem:[%s0 + $0x98] sm:$0xf]
    %v73 = vld [vmem:[%s0 + $0x9c] sm:$0xf]
    %v74 = vld [vmem:[%s0 + $0xa0] sm:$0xf]
    %v75 = vld [vmem:[%s0 + $0xa4] sm:$0xf]
    %v76 = vld [vmem:[%s0 + $0xa8] sm:$0xf]
    %v77 = vld [vmem:[%s0 + $0xac] sm:$0xf]
    %v78 = vld [vmem:[%s0 + $0xb0] sm:$0xf]
    %v79 = vld [vmem:[%s0 + $0xb4] sm:$0xf]
    %v80 = vld [vmem:[%s0 + $0xb8] sm:$0xf]
    %v81 = vld [vmem:[%s0 + $0xbc] sm:$0xf]
    %v82 = vld [vmem:[%s0 + $0xc0] sm:$0xf]
    %v83 = vld [vmem:[%s0 + $0xc4] sm:$0xf]
    %v84 = vld [vmem:[%s0 + $0xc8] sm:$0xf]
    %v85 = vld [vmem:[%s0 + $0xcc] sm:$0xf]
    %v86 = vld [vmem:[%s0 + $0xd0] sm:$0xf]
    %v87 = vld [vmem:[%s0 + $0xd4] sm:$0xf]
    %v88 = vld [vmem:[%s0 + $0xd8] sm:$0xf]
    %v89 = vld [vmem:[%s0 + $0xdc] sm:$0xf]
    %v90 = vld [vmem:[%s0 + $0xe0] sm:$0xf]
    %v91 = vld [vmem:[%s0 + $0xe4] sm:$0xf]
    %v92 = vld [vmem:[%s0 + $0xe8] sm:$0xf]
    %v93 = vld [vmem:[%s0 + $0xec] sm:$0xf]
    %v94 = vld [vmem:[%s0 + $0xf0] sm:$0xf]
    %v95 = vld [vmem:[%s0 + $0xf4] sm:$0xf]
    %v96 = vld [vmem:[%s0 + $0xf8] sm:$0xf]
    %v97 = vld [vmem:[%s0 + $0xfc] sm:$0xf]
    %v98 = vld [vmem:[%s1] sm:$0xf]
    %v99 = vld [vmem:[%s1 + $0x4] sm:$0xf]
    %v100 = vld [vmem:[%s2] sm:$0x1]
    %v102 = vlaneseq
    %v103 = vshrl.u32 %v102, 7
    %v104 = vsub.s32 0, %v103
    %v105 = vrot.slane %v100, %v104
    %v171 = vunpack.c.l.b16 %v34
    %v172 = vunpack.c.l.b16 %v35
    %v173 = vunpack.c.l.b16 %v36
    %v174 = vunpack.c.l.b16 %v37
    %v175 = vunpack.c.l.b16 %v38
    %v176 = vunpack.c.l.b16 %v39
    %v177 = vunpack.c.l.b16 %v40
    %v178 = vunpack.c.l.b16 %v41
    %v179 = vunpack.c.l.b16 %v42
    %v180 = vunpack.c.l.b16 %v43
    %v181 = vunpack.c.l.b16 %v44
    %v182 = vunpack.c.l.b16 %v45
    %v183 = vunpack.c.l.b16 %v46
    %v184 = vunpack.c.l.b16 %v47
    %v185 = vunpack.c.l.b16 %v48
    %v186 = vunpack.c.l.b16 %v49
    %v187 = vunpack.c.l.b16 %v50
    %v188 = vunpack.c.l.b16 %v51
    %v189 = vunpack.c.l.b16 %v52
    %v190 = vunpack.c.l.b16 %v53
    %v191 = vunpack.c.l.b16 %v54
    %v192 = vunpack.c.l.b16 %v55
    %v193 = vunpack.c.l.b16 %v56
    %v194 = vunpack.c.l.b16 %v57
    %v195 = vunpack.c.l.b16 %v58
    %v196 = vunpack.c.l.b16 %v59
    %v197 = vunpack.c.l.b16 %v60
    %v198 = vunpack.c.l.b16 %v61
    %v199 = vunpack.c.l.b16 %v62
    %v200 = vunpack.c.l.b16 %v63
    %v201 = vunpack.c.l.b16 %v64
    %v202 = vunpack.c.l.b16 %v65
    %v203 = vunpack.c.l.b16 %v66
    %v204 = vunpack.c.l.b16 %v67
    %v205 = vunpack.c.l.b16 %v68
    %v206 = vunpack.c.l.b16 %v69
    %v207 = vunpack.c.l.b16 %v70
    %v208 = vunpack.c.l.b16 %v71
    %v209 = vunpack.c.l.b16 %v72
    %v210 = vunpack.c.l.b16 %v73
    %v211 = vunpack.c.l.b16 %v74
    %v212 = vunpack.c.l.b16 %v75
    %v213 = vunpack.c.l.b16 %v76
    %v214 = vunpack.c.l.b16 %v77
    %v215 = vunpack.c.l.b16 %v78
    %v216 = vunpack.c.l.b16 %v79
    %v217 = vunpack.c.l.b16 %v80
    %v218 = vunpack.c.l.b16 %v81
    %v219 = vunpack.c.l.b16 %v82
    %v220 = vunpack.c.l.b16 %v83
    %v221 = vunpack.c.l.b16 %v84
    %v222 = vunpack.c.l.b16 %v85
    %v223 = vunpack.c.l.b16 %v86
    %v224 = vunpack.c.l.b16 %v87
    %v225 = vunpack.c.l.b16 %v88
    %v226 = vunpack.c.l.b16 %v89
    %v227 = vunpack.c.l.b16 %v90
    %v228 = vunpack.c.l.b16 %v91
    %v229 = vunpack.c.l.b16 %v92
    %v230 = vunpack.c.l.b16 %v93
    %v231 = vunpack.c.l.b16 %v94
    %v232 = vunpack.c.l.b16 %v95
    %v233 = vunpack.c.l.b16 %v96
    %v234 = vunpack.c.l.b16 %v97
    %v235 = vpack.c.b16 %v172, %v171
    %v236 = vpack.c.b16 %v174, %v173
    %v237 = vpack.c.b16 %v176, %v175
    %v238 = vpack.c.b16 %v178, %v177
    %v239 = vpack.c.b16 %v180, %v179
    %v240 = vpack.c.b16 %v182, %v181
    %v241 = vpack.c.b16 %v184, %v183
    %v242 = vpack.c.b16 %v186, %v185
    %v243 = vpack.c.b16 %v188, %v187
    %v244 = vpack.c.b16 %v190, %v189
    %v245 = vpack.c.b16 %v192, %v191
    %v246 = vpack.c.b16 %v194, %v193
    %v247 = vpack.c.b16 %v196, %v195
    %v248 = vpack.c.b16 %v198, %v197
    %v249 = vpack.c.b16 %v200, %v199
    %v250 = vpack.c.b16 %v202, %v201
    %v251 = vpack.c.b16 %v204, %v203
    %v252 = vpack.c.b16 %v206, %v205
    %v253 = vpack.c.b16 %v208, %v207
    %v254 = vpack.c.b16 %v210, %v209
    %v255 = vpack.c.b16 %v212, %v211
    %v256 = vpack.c.b16 %v214, %v213
    %v257 = vpack.c.b16 %v216, %v215
    %v258 = vpack.c.b16 %v218, %v217
    %v259 = vpack.c.b16 %v220, %v219
    %v260 = vpack.c.b16 %v222, %v221
    %v261 = vpack.c.b16 %v224, %v223
    %v262 = vpack.c.b16 %v226, %v225
    %v263 = vpack.c.b16 %v228, %v227
    %v264 = vpack.c.b16 %v230, %v229
    %v265 = vpack.c.b16 %v232, %v231
    %v266 = vpack.c.b16 %v234, %v233
    %v269 = vunpack.c.l.b16 %v98
    %v270 = vunpack.c.l.b16 %v99
    %v271 = vpack.c.b16 %v270, %v269
    %vm273 = vcmask 130048
    %v275 = vsel %vm273, %v235, 0
    %v278 = vsel %vm273, %v236, 0
    %v281 = vsel %vm273, %v237, 0
    %v284 = vsel %vm273, %v238, 0
    %v287 = vsel %vm273, %v239, 0
    %v290 = vsel %vm273, %v240, 0
    %v293 = vsel %vm273, %v241, 0
    %v296 = vsel %vm273, %v242, 0
    %v299 = vsel %vm273, %v243, 0
    %v302 = vsel %vm273, %v244, 0
    %v305 = vsel %vm273, %v245, 0
    %v308 = vsel %vm273, %v246, 0
    %v311 = vsel %vm273, %v247, 0
    %v314 = vsel %vm273, %v248, 0
    %v317 = vsel %vm273, %v249, 0
    %v320 = vsel %vm273, %v250, 0
    %v323 = vsel %vm273, %v251, 0
    %v326 = vsel %vm273, %v252, 0
    %v329 = vsel %vm273, %v253, 0
    %v332 = vsel %vm273, %v254, 0
    %v335 = vsel %vm273, %v255, 0
    %v338 = vsel %vm273, %v256, 0
    %v341 = vsel %vm273, %v257, 0
    %v344 = vsel %vm273, %v258, 0
    %v347 = vsel %vm273, %v259, 0
    %v350 = vsel %vm273, %v260, 0
    %v353 = vsel %vm273, %v261, 0
    %v356 = vsel %vm273, %v262, 0
    %v359 = vsel %vm273, %v263, 0
    %v362 = vsel %vm273, %v264, 0
    %v365 = vsel %vm273, %v265, 0
    %v368 = vsel %vm273, %v266, 0
    %370 = vmatprep.subr.bf16.mxu0 0
    %371 = vmatpush1.bf16.msra.mxu0 0
    %372 = vmatprep.subr.bf16.mxu0 0
    %373 = vmatpush1.bf16.msra.mxu0 0
    %374 = vmatprep.subr.bf16.mxu0 0
    %375 = vmatpush1.bf16.msra.mxu0 0
    %376 = vmatprep.subr.bf16.mxu0 0
    %377 = vmatpush1.bf16.msra.mxu0 0
    %378 = vmatprep.subr.bf16.mxu0 0
    %379 = vmatpush1.bf16.msra.mxu0 0
    %380 = vmatprep.subr.bf16.mxu0 0
    %381 = vmatpush1.bf16.msra.mxu0 0
    %382 = vmatprep.subr.bf16.mxu0 0
    %383 = vmatpush1.bf16.msra.mxu0 0
    %384 = vmatprep.subr.bf16.mxu0 0
    %385 = vmatpush1.bf16.msra.mxu0 %v271
    %386 = vmatprep.subr.bf16.mxu0 0
    %387 = vmatpush2.bf16.msra.mxu0 0
    %388 = vmatprep.subr.bf16.mxu0 0
    %389 = vmatpush2.bf16.msra.mxu0 0
    %390 = vmatprep.subr.bf16.mxu0 0
    %391 = vmatpush2.bf16.msra.mxu0 0
    %392 = vmatprep.subr.bf16.mxu0 0
    %393 = vmatpush2.bf16.msra.mxu0 0
    %394 = vmatprep.subr.bf16.mxu0 0
    %395 = vmatpush2.bf16.msra.mxu0 0
    %396 = vmatprep.subr.bf16.mxu0 0
    %397 = vmatpush2.bf16.msra.mxu0 0
    %398 = vmatprep.subr.bf16.mxu0 0
    %399 = vmatpush2.bf16.msra.mxu0 0
    %400 = vmatprep.subr.bf16.mxu0 0
    %401 = vmatpush2.bf16.msra.mxu0 0
    %402 = vmatprep.mubr.bf16.mxu0 0
    %403 = vmatmul.mubr.bf16.gmra.mxu0 %v275
    %v404 = vpop.f32.mrf.mxu0
    %v405 = vadd.f32 %v105, %v404
    %v406 = vpop.f32.mrf.mxu0
    %v407 = vpop.f32.mrf.mxu0
    %v408 = vadd.f32 %v105, %v407
    %v409 = vpop.f32.mrf.mxu0
    %410 = vmatprep.mubr.bf16.mxu0 0
    %411 = vmatmul.mubr.bf16.gmra.mxu0 %v278
    %v412 = vpop.f32.mrf.mxu0
    %v413 = vadd.f32 %v105, %v412
    %v414 = vpop.f32.mrf.mxu0
    %v415 = vpop.f32.mrf.mxu0
    %v416 = vadd.f32 %v105, %v415
    %v417 = vpop.f32.mrf.mxu0
    %418 = vmatprep.mubr.bf16.mxu0 0
    %419 = vmatmul.mubr.bf16.gmra.mxu0 %v281
    %v420 = vpop.f32.mrf.mxu0
    %v421 = vadd.f32 %v105, %v420
    %v422 = vpop.f32.mrf.mxu0
    %v423 = vpop.f32.mrf.mxu0
    %v424 = vadd.f32 %v105, %v423
    %v425 = vpop.f32.mrf.mxu0
    %426 = vmatprep.mubr.bf16.mxu0 0
    %427 = vmatmul.mubr.bf16.gmra.mxu0 %v284
    %v428 = vpop.f32.mrf.mxu0
    %v429 = vadd.f32 %v105, %v428
    %v430 = vpop.f32.mrf.mxu0
    %v431 = vpop.f32.mrf.mxu0
    %v432 = vadd.f32 %v105, %v431
    %v433 = vpop.f32.mrf.mxu0
    %434 = vmatprep.mubr.bf16.mxu0 0
    %435 = vmatmul.mubr.bf16.gmra.mxu0 %v287
    %v436 = vpop.f32.mrf.mxu0
    %v437 = vadd.f32 %v105, %v436
    %v438 = vpop.f32.mrf.mxu0
    %v439 = vpop.f32.mrf.mxu0
    %v440 = vadd.f32 %v105, %v439
    %v441 = vpop.f32.mrf.mxu0
    %442 = vmatprep.mubr.bf16.mxu0 0
    %443 = vmatmul.mubr.bf16.gmra.mxu0 %v290
    %v444 = vpop.f32.mrf.mxu0
    %v445 = vadd.f32 %v105, %v444
    %v446 = vpop.f32.mrf.mxu0
    %v447 = vpop.f32.mrf.mxu0
    %v448 = vadd.f32 %v105, %v447
    %v449 = vpop.f32.mrf.mxu0
    %450 = vmatprep.mubr.bf16.mxu0 0
    %451 = vmatmul.mubr.bf16.gmra.mxu0 %v293
    %v452 = vpop.f32.mrf.mxu0
    %v453 = vadd.f32 %v105, %v452
    %v454 = vpop.f32.mrf.mxu0
    %v455 = vpop.f32.mrf.mxu0
    %v456 = vadd.f32 %v105, %v455
    %v457 = vpop.f32.mrf.mxu0
    %458 = vmatprep.mubr.bf16.mxu0 0
    %459 = vmatmul.mubr.bf16.gmra.mxu0 %v296
    %v460 = vpop.f32.mrf.mxu0
    %v461 = vadd.f32 %v105, %v460
    %v462 = vpop.f32.mrf.mxu0
    %v463 = vpop.f32.mrf.mxu0
    %v464 = vadd.f32 %v105, %v463
    %v465 = vpop.f32.mrf.mxu0
    %466 = vmatprep.mubr.bf16.mxu0 0
    %467 = vmatmul.mubr.bf16.gmra.mxu0 %v299
    %v468 = vpop.f32.mrf.mxu0
    %v469 = vadd.f32 %v105, %v468
    %v470 = vpop.f32.mrf.mxu0
    %v471 = vpop.f32.mrf.mxu0
    %v472 = vadd.f32 %v105, %v471
    %v473 = vpop.f32.mrf.mxu0
    %474 = vmatprep.mubr.bf16.mxu0 0
    %475 = vmatmul.mubr.bf16.gmra.mxu0 %v302
    %v476 = vpop.f32.mrf.mxu0
    %v477 = vadd.f32 %v105, %v476
    %v478 = vpop.f32.mrf.mxu0
    %v479 = vpop.f32.mrf.mxu0
    %v480 = vadd.f32 %v105, %v479
    %v481 = vpop.f32.mrf.mxu0
    %482 = vmatprep.mubr.bf16.mxu0 0
    %483 = vmatmul.mubr.bf16.gmra.mxu0 %v305
    %v484 = vpop.f32.mrf.mxu0
    %v485 = vadd.f32 %v105, %v484
    %v486 = vpop.f32.mrf.mxu0
    %v487 = vpop.f32.mrf.mxu0
    %v488 = vadd.f32 %v105, %v487
    %v489 = vpop.f32.mrf.mxu0
    %490 = vmatprep.mubr.bf16.mxu0 0
    %491 = vmatmul.mubr.bf16.gmra.mxu0 %v308
    %v492 = vpop.f32.mrf.mxu0
    %v493 = vadd.f32 %v105, %v492
    %v494 = vpop.f32.mrf.mxu0
    %v495 = vpop.f32.mrf.mxu0
    %v496 = vadd.f32 %v105, %v495
    %v497 = vpop.f32.mrf.mxu0
    %498 = vmatprep.mubr.bf16.mxu0 0
    %499 = vmatmul.mubr.bf16.gmra.mxu0 %v311
    %v500 = vpop.f32.mrf.mxu0
    %v501 = vadd.f32 %v105, %v500
    %v502 = vpop.f32.mrf.mxu0
    %v503 = vpop.f32.mrf.mxu0
    %v504 = vadd.f32 %v105, %v503
    %v505 = vpop.f32.mrf.mxu0
    %506 = vmatprep.mubr.bf16.mxu0 0
    %507 = vmatmul.mubr.bf16.gmra.mxu0 %v314
    %v508 = vpop.f32.mrf.mxu0
    %v509 = vadd.f32 %v105, %v508
    %v510 = vpop.f32.mrf.mxu0
    %v511 = vpop.f32.mrf.mxu0
    %v512 = vadd.f32 %v105, %v511
    %v513 = vpop.f32.mrf.mxu0
    %514 = vmatprep.mubr.bf16.mxu0 0
    %515 = vmatmul.mubr.bf16.gmra.mxu0 %v317
    %v516 = vpop.f32.mrf.mxu0
    %v517 = vadd.f32 %v105, %v516
    %v518 = vpop.f32.mrf.mxu0
    %v519 = vpop.f32.mrf.mxu0
    %v520 = vadd.f32 %v105, %v519
    %v521 = vpop.f32.mrf.mxu0
    %522 = vmatprep.mubr.bf16.mxu0 0
    %523 = vmatmul.mubr.bf16.gmra.mxu0 %v320
    %v524 = vpop.f32.mrf.mxu0
    %v525 = vadd.f32 %v105, %v524
    %v526 = vpop.f32.mrf.mxu0
    %v527 = vpop.f32.mrf.mxu0
    %v528 = vadd.f32 %v105, %v527
    %v529 = vpop.f32.mrf.mxu0
    %530 = vmatprep.mubr.bf16.mxu0 0
    %531 = vmatmul.mubr.bf16.gmra.mxu0 %v323
    %v532 = vpop.f32.mrf.mxu0
    %v533 = vadd.f32 %v105, %v532
    %v534 = vpop.f32.mrf.mxu0
    %v535 = vpop.f32.mrf.mxu0
    %v536 = vadd.f32 %v105, %v535
    %v537 = vpop.f32.mrf.mxu0
    %538 = vmatprep.mubr.bf16.mxu0 0
    %539 = vmatmul.mubr.bf16.gmra.mxu0 %v326
    %v540 = vpop.f32.mrf.mxu0
    %v541 = vadd.f32 %v105, %v540
    %v542 = vpop.f32.mrf.mxu0
    %v543 = vpop.f32.mrf.mxu0
    %v544 = vadd.f32 %v105, %v543
    %v545 = vpop.f32.mrf.mxu0
    %546 = vmatprep.mubr.bf16.mxu0 0
    %547 = vmatmul.mubr.bf16.gmra.mxu0 %v329
    %v548 = vpop.f32.mrf.mxu0
    %v549 = vadd.f32 %v105, %v548
    %v550 = vpop.f32.mrf.mxu0
    %v551 = vpop.f32.mrf.mxu0
    %v552 = vadd.f32 %v105, %v551
    %v553 = vpop.f32.mrf.mxu0
    %554 = vmatprep.mubr.bf16.mxu0 0
    %555 = vmatmul.mubr.bf16.gmra.mxu0 %v332
    %v556 = vpop.f32.mrf.mxu0
    %v557 = vadd.f32 %v105, %v556
    %v558 = vpop.f32.mrf.mxu0
    %v559 = vpop.f32.mrf.mxu0
    %v560 = vadd.f32 %v105, %v559
    %v561 = vpop.f32.mrf.mxu0
    %562 = vmatprep.mubr.bf16.mxu0 0
    %563 = vmatmul.mubr.bf16.gmra.mxu0 %v335
    %v564 = vpop.f32.mrf.mxu0
    %v565 = vadd.f32 %v105, %v564
    %v566 = vpop.f32.mrf.mxu0
    %v567 = vpop.f32.mrf.mxu0
    %v568 = vadd.f32 %v105, %v567
    %v569 = vpop.f32.mrf.mxu0
    %570 = vmatprep.mubr.bf16.mxu0 0
    %571 = vmatmul.mubr.bf16.gmra.mxu0 %v338
    %v572 = vpop.f32.mrf.mxu0
    %v573 = vadd.f32 %v105, %v572
    %v574 = vpop.f32.mrf.mxu0
    %v575 = vpop.f32.mrf.mxu0
    %v576 = vadd.f32 %v105, %v575
    %v577 = vpop.f32.mrf.mxu0
    %578 = vmatprep.mubr.bf16.mxu0 0
    %579 = vmatmul.mubr.bf16.gmra.mxu0 %v341
    %v580 = vpop.f32.mrf.mxu0
    %v581 = vadd.f32 %v105, %v580
    %v582 = vpop.f32.mrf.mxu0
    %v583 = vpop.f32.mrf.mxu0
    %v584 = vadd.f32 %v105, %v583
    %v585 = vpop.f32.mrf.mxu0
    %586 = vmatprep.mubr.bf16.mxu0 0
    %587 = vmatmul.mubr.bf16.gmra.mxu0 %v344
    %v588 = vpop.f32.mrf.mxu0
    %v589 = vadd.f32 %v105, %v588
    %v590 = vpop.f32.mrf.mxu0
    %v591 = vpop.f32.mrf.mxu0
    %v592 = vadd.f32 %v105, %v591
    %v593 = vpop.f32.mrf.mxu0
    %594 = vmatprep.mubr.bf16.mxu0 0
    %595 = vmatmul.mubr.bf16.gmra.mxu0 %v347
    %v596 = vpop.f32.mrf.mxu0
    %v597 = vadd.f32 %v105, %v596
    %v598 = vpop.f32.mrf.mxu0
    %v599 = vpop.f32.mrf.mxu0
    %v600 = vadd.f32 %v105, %v599
    %v601 = vpop.f32.mrf.mxu0
    %602 = vmatprep.mubr.bf16.mxu0 0
    %603 = vmatmul.mubr.bf16.gmra.mxu0 %v350
    %v604 = vpop.f32.mrf.mxu0
    %v605 = vadd.f32 %v105, %v604
    %v606 = vpop.f32.mrf.mxu0
    %v607 = vpop.f32.mrf.mxu0
    %v608 = vadd.f32 %v105, %v607
    %v609 = vpop.f32.mrf.mxu0
    %610 = vmatprep.mubr.bf16.mxu0 0
    %611 = vmatmul.mubr.bf16.gmra.mxu0 %v353
    %v612 = vpop.f32.mrf.mxu0
    %v613 = vadd.f32 %v105, %v612
    %v614 = vpop.f32.mrf.mxu0
    %v615 = vpop.f32.mrf.mxu0
    %v616 = vadd.f32 %v105, %v615
    %v617 = vpop.f32.mrf.mxu0
    %618 = vmatprep.mubr.bf16.mxu0 0
    %619 = vmatmul.mubr.bf16.gmra.mxu0 %v356
    %v620 = vpop.f32.mrf.mxu0
    %v621 = vadd.f32 %v105, %v620
    %v622 = vpop.f32.mrf.mxu0
    %v623 = vpop.f32.mrf.mxu0
    %v624 = vadd.f32 %v105, %v623
    %v625 = vpop.f32.mrf.mxu0
    %626 = vmatprep.mubr.bf16.mxu0 0
    %627 = vmatmul.mubr.bf16.gmra.mxu0 %v359
    %v628 = vpop.f32.mrf.mxu0
    %v629 = vadd.f32 %v105, %v628
    %v630 = vpop.f32.mrf.mxu0
    %v631 = vpop.f32.mrf.mxu0
    %v632 = vadd.f32 %v105, %v631
    %v633 = vpop.f32.mrf.mxu0
    %634 = vmatprep.mubr.bf16.mxu0 0
    %635 = vmatmul.mubr.bf16.gmra.mxu0 %v362
    %v636 = vpop.f32.mrf.mxu0
    %v637 = vadd.f32 %v105, %v636
    %v638 = vpop.f32.mrf.mxu0
    %v639 = vpop.f32.mrf.mxu0
    %v640 = vadd.f32 %v105, %v639
    %v641 = vpop.f32.mrf.mxu0
    %642 = vmatprep.mubr.bf16.mxu0 0
    %643 = vmatmul.mubr.bf16.gmra.mxu0 %v365
    %v644 = vpop.f32.mrf.mxu0
    %v645 = vadd.f32 %v105, %v644
    %v646 = vpop.f32.mrf.mxu0
    %v647 = vpop.f32.mrf.mxu0
    %v648 = vadd.f32 %v105, %v647
    %v649 = vpop.f32.mrf.mxu0
    %650 = vmatprep.mubr.bf16.mxu0 0
    %651 = vmatmul.mubr.bf16.gmra.mxu0 %v368
    %v652 = vpop.f32.mrf.mxu0
    %v653 = vadd.f32 %v105, %v652
    %v654 = vpop.f32.mrf.mxu0
    %v655 = vpop.f32.mrf.mxu0
    %v656 = vadd.f32 %v105, %v655
    %v657 = vpop.f32.mrf.mxu0
    %658 = vdwg.mxu0
    %v659 = vmax.f32 %v405, 0.0
    %v660 = vmax.f32 %v408, 0.0
    %v661 = vmax.f32 %v413, 0.0
    %v662 = vmax.f32 %v416, 0.0
    %v663 = vmax.f32 %v421, 0.0
    %v664 = vmax.f32 %v424, 0.0
    %v665 = vmax.f32 %v429, 0.0
    %v666 = vmax.f32 %v432, 0.0
    %v667 = vmax.f32 %v437, 0.0
    %v668 = vmax.f32 %v440, 0.0
    %v669 = vmax.f32 %v445, 0.0
    %v670 = vmax.f32 %v448, 0.0
    %v671 = vmax.f32 %v453, 0.0
    %v672 = vmax.f32 %v456, 0.0
    %v673 = vmax.f32 %v461, 0.0
    %v674 = vmax.f32 %v464, 0.0
    %v675 = vmax.f32 %v469, 0.0
    %v676 = vmax.f32 %v472, 0.0
    %v677 = vmax.f32 %v477, 0.0
    %v678 = vmax.f32 %v480, 0.0
    %v679 = vmax.f32 %v485, 0.0
    %v680 = vmax.f32 %v488, 0.0
    %v681 = vmax.f32 %v493, 0.0
    %v682 = vmax.f32 %v496, 0.0
    %v683 = vmax.f32 %v501, 0.0
    %v684 = vmax.f32 %v504, 0.0
    %v685 = vmax.f32 %v509, 0.0
    %v686 = vmax.f32 %v512, 0.0
    %v687 = vmax.f32 %v517, 0.0
    %v688 = vmax.f32 %v520, 0.0
    %v689 = vmax.f32 %v525, 0.0
    %v690 = vmax.f32 %v528, 0.0
    %v691 = vmax.f32 %v533, 0.0
    %v692 = vmax.f32 %v536, 0.0
    %v693 = vmax.f32 %v541, 0.0
    %v694 = vmax.f32 %v544, 0.0
    %v695 = vmax.f32 %v549, 0.0
    %v696 = vmax.f32 %v552, 0.0
    %v697 = vmax.f32 %v557, 0.0
    %v698 = vmax.f32 %v560, 0.0
    %v699 = vmax.f32 %v565, 0.0
    %v700 = vmax.f32 %v568, 0.0
    %v701 = vmax.f32 %v573, 0.0
    %v702 = vmax.f32 %v576, 0.0
    %v703 = vmax.f32 %v581, 0.0
    %v704 = vmax.f32 %v584, 0.0
    %v705 = vmax.f32 %v589, 0.0
    %v706 = vmax.f32 %v592, 0.0
    %v707 = vmax.f32 %v597, 0.0
    %v708 = vmax.f32 %v600, 0.0
    %v709 = vmax.f32 %v605, 0.0
    %v710 = vmax.f32 %v608, 0.0
    %v711 = vmax.f32 %v613, 0.0
    %v712 = vmax.f32 %v616, 0.0
    %v713 = vmax.f32 %v621, 0.0
    %v714 = vmax.f32 %v624, 0.0
    %v715 = vmax.f32 %v629, 0.0
    %v716 = vmax.f32 %v632, 0.0
    %v717 = vmax.f32 %v637, 0.0
    %v718 = vmax.f32 %v640, 0.0
    %v719 = vmax.f32 %v645, 0.0
    %v720 = vmax.f32 %v648, 0.0
    %v721 = vmax.f32 %v653, 0.0
    %v722 = vmax.f32 %v656, 0.0
    %v723 = vpack.c.bf16 %v660, %v659
    %v724 = vpack.c.bf16 %v662, %v661
    %v725 = vpack.c.bf16 %v664, %v663
    %v726 = vpack.c.bf16 %v666, %v665
    %v727 = vpack.c.bf16 %v668, %v667
    %v728 = vpack.c.bf16 %v670, %v669
    %v729 = vpack.c.bf16 %v672, %v671
    %v730 = vpack.c.bf16 %v674, %v673
    %v731 = vpack.c.bf16 %v676, %v675
    %v732 = vpack.c.bf16 %v678, %v677
    %v733 = vpack.c.bf16 %v680, %v679
    %v734 = vpack.c.bf16 %v682, %v681
    %v735 = vpack.c.bf16 %v684, %v683
    %v736 = vpack.c.bf16 %v686, %v685
    %v737 = vpack.c.bf16 %v688, %v687
    %v738 = vpack.c.bf16 %v690, %v689
    %v739 = vpack.c.bf16 %v692, %v691
    %v740 = vpack.c.bf16 %v694, %v693
    %v741 = vpack.c.bf16 %v696, %v695
    %v742 = vpack.c.bf16 %v698, %v697
    %v743 = vpack.c.bf16 %v700, %v699
    %v744 = vpack.c.bf16 %v702, %v701
    %v745 = vpack.c.bf16 %v704, %v703
    %v746 = vpack.c.bf16 %v706, %v705
    %v747 = vpack.c.bf16 %v708, %v707
    %v748 = vpack.c.bf16 %v710, %v709
    %v749 = vpack.c.bf16 %v712, %v711
    %v750 = vpack.c.bf16 %v714, %v713
    %v751 = vpack.c.bf16 %v716, %v715
    %v752 = vpack.c.bf16 %v718, %v717
    %v753 = vpack.c.bf16 %v720, %v719
    %v754 = vpack.c.bf16 %v722, %v721
    %v755 = vld [vmem:[%s3] sm:$0xf]
    %v756 = vld [vmem:[%s3 + $0x4] sm:$0xf]
    %v757 = vld [vmem:[%s3 + $0x8] sm:$0xf]
    %v758 = vld [vmem:[%s3 + $0xc] sm:$0xf]
    %v759 = vld [vmem:[%s4] sm:$0x1]
    %v761 = vlaneseq
    %v762 = vshrl.u32 %v761, 7
    %v763 = vsub.s32 0, %v762
    %v764 = vrot.slane %v759, %v763
    %v770 = vunpack.c.l.b16 %v755
    %v771 = vunpack.c.l.b16 %v756
    %v772 = vunpack.c.l.b16 %v757
    %v773 = vunpack.c.l.b16 %v758
    %v774 = vpack.c.b16 %v771, %v770
    %v775 = vpack.c.b16 %v773, %v772
    %vm778 = vcmask 261120
    %v780 = vsel %vm778, %v723, 0
    %v783 = vsel %vm778, %v724, 0
    %v786 = vsel %vm778, %v725, 0
    %v789 = vsel %vm778, %v726, 0
    %v792 = vsel %vm778, %v727, 0
    %v795 = vsel %vm778, %v728, 0
    %v798 = vsel %vm778, %v729, 0
    %v801 = vsel %vm778, %v730, 0
    %v804 = vsel %vm778, %v731, 0
    %v807 = vsel %vm778, %v732, 0
    %v810 = vsel %vm778, %v733, 0
    %v813 = vsel %vm778, %v734, 0
    %v816 = vsel %vm778, %v735, 0
    %v819 = vsel %vm778, %v736, 0
    %v822 = vsel %vm778, %v737, 0
    %v825 = vsel %vm778, %v738, 0
    %v828 = vsel %vm778, %v739, 0
    %v831 = vsel %vm778, %v740, 0
    %v834 = vsel %vm778, %v741, 0
    %v837 = vsel %vm778, %v742, 0
    %v840 = vsel %vm778, %v743, 0
    %v843 = vsel %vm778, %v744, 0
    %v846 = vsel %vm778, %v745, 0
    %v849 = vsel %vm778, %v746, 0
    %v852 = vsel %vm778, %v747, 0
    %v855 = vsel %vm778, %v748, 0
    %v858 = vsel %vm778, %v749, 0
    %v861 = vsel %vm778, %v750, 0
    %v864 = vsel %vm778, %v751, 0
    %v867 = vsel %vm778, %v752, 0
    %v870 = vsel %vm778, %v753, 0
    %v873 = vsel %vm778, %v754, 0
    %875 = vmatprep.subr.bf16.mxu0 0
    %876 = vmatpush1.bf16.msra.mxu0 0
    %877 = vmatprep.subr.bf16.mxu0 0
    %878 = vmatpush1.bf16.msra.mxu0 0
    %879 = vmatprep.subr.bf16.mxu0 0
    %880 = vmatpush1.bf16.msra.mxu0 0
    %881 = vmatprep.subr.bf16.mxu0 0
    %882 = vmatpush1.bf16.msra.mxu0 0
    %883 = vmatprep.subr.bf16.mxu0 0
    %884 = vmatpush1.bf16.msra.mxu0 0
    %885 = vmatprep.subr.bf16.mxu0 0
    %886 = vmatpush1.bf16.msra.mxu0 0
    %887 = vmatprep.subr.bf16.mxu0 0
    %888 = vmatpush1.bf16.msra.mxu0 %v775
    %889 = vmatprep.subr.bf16.mxu0 0
    %890 = vmatpush1.bf16.msra.mxu0 %v774
    %891 = vmatprep.subr.bf16.mxu0 0
    %892 = vmatpush2.bf16.msra.mxu0 0
    %893 = vmatprep.subr.bf16.mxu0 0
    %894 = vmatpush2.bf16.msra.mxu0 0
    %895 = vmatprep.subr.bf16.mxu0 0
    %896 = vmatpush2.bf16.msra.mxu0 0
    %897 = vmatprep.subr.bf16.mxu0 0
    %898 = vmatpush2.bf16.msra.mxu0 0
    %899 = vmatprep.subr.bf16.mxu0 0
    %900 = vmatpush2.bf16.msra.mxu0 0
    %901 = vmatprep.subr.bf16.mxu0 0
    %902 = vmatpush2.bf16.msra.mxu0 0
    %903 = vmatprep.subr.bf16.mxu0 0
    %904 = vmatpush2.bf16.msra.mxu0 0
    %905 = vmatprep.subr.bf16.mxu0 0
    %906 = vmatpush2.bf16.msra.mxu0 0
    %907 = vmatprep.mubr.bf16.mxu0 0
    %908 = vmatmul.mubr.bf16.gmra.mxu0 %v780
    %v909 = vpop.f32.mrf.mxu0
    %v910 = vadd.f32 %v764, %v909
    %v911 = vpop.f32.mrf.mxu0
    %v912 = vpop.f32.mrf.mxu0
    %v913 = vadd.f32 %v764, %v912
    %v914 = vpop.f32.mrf.mxu0
    %915 = vmatprep.mubr.bf16.mxu0 0
    %916 = vmatmul.mubr.bf16.gmra.mxu0 %v783
    %v917 = vpop.f32.mrf.mxu0
    %v918 = vadd.f32 %v764, %v917
    %v919 = vpop.f32.mrf.mxu0
    %v920 = vpop.f32.mrf.mxu0
    %v921 = vadd.f32 %v764, %v920
    %v922 = vpop.f32.mrf.mxu0
    %923 = vmatprep.mubr.bf16.mxu0 0
    %924 = vmatmul.mubr.bf16.gmra.mxu0 %v786
    %v925 = vpop.f32.mrf.mxu0
    %v926 = vadd.f32 %v764, %v925
    %v927 = vpop.f32.mrf.mxu0
    %v928 = vpop.f32.mrf.mxu0
    %v929 = vadd.f32 %v764, %v928
    %v930 = vpop.f32.mrf.mxu0
    %931 = vmatprep.mubr.bf16.mxu0 0
    %932 = vmatmul.mubr.bf16.gmra.mxu0 %v789
    %v933 = vpop.f32.mrf.mxu0
    %v934 = vadd.f32 %v764, %v933
    %v935 = vpop.f32.mrf.mxu0
    %v936 = vpop.f32.mrf.mxu0
    %v937 = vadd.f32 %v764, %v936
    %v938 = vpop.f32.mrf.mxu0
    %939 = vmatprep.mubr.bf16.mxu0 0
    %940 = vmatmul.mubr.bf16.gmra.mxu0 %v792
    %v941 = vpop.f32.mrf.mxu0
    %v942 = vadd.f32 %v764, %v941
    %v943 = vpop.f32.mrf.mxu0
    %v944 = vpop.f32.mrf.mxu0
    %v945 = vadd.f32 %v764, %v944
    %v946 = vpop.f32.mrf.mxu0
    %947 = vmatprep.mubr.bf16.mxu0 0
    %948 = vmatmul.mubr.bf16.gmra.mxu0 %v795
    %v949 = vpop.f32.mrf.mxu0
    %v950 = vadd.f32 %v764, %v949
    %v951 = vpop.f32.mrf.mxu0
    %v952 = vpop.f32.mrf.mxu0
    %v953 = vadd.f32 %v764, %v952
    %v954 = vpop.f32.mrf.mxu0
    %955 = vmatprep.mubr.bf16.mxu0 0
    %956 = vmatmul.mubr.bf16.gmra.mxu0 %v798
    %v957 = vpop.f32.mrf.mxu0
    %v958 = vadd.f32 %v764, %v957
    %v959 = vpop.f32.mrf.mxu0
    %v960 = vpop.f32.mrf.mxu0
    %v961 = vadd.f32 %v764, %v960
    %v962 = vpop.f32.mrf.mxu0
    %963 = vmatprep.mubr.bf16.mxu0 0
    %964 = vmatmul.mubr.bf16.gmra.mxu0 %v801
    %v965 = vpop.f32.mrf.mxu0
    %v966 = vadd.f32 %v764, %v965
    %v967 = vpop.f32.mrf.mxu0
    %v968 = vpop.f32.mrf.mxu0
    %v969 = vadd.f32 %v764, %v968
    %v970 = vpop.f32.mrf.mxu0
    %971 = vmatprep.mubr.bf16.mxu0 0
    %972 = vmatmul.mubr.bf16.gmra.mxu0 %v804
    %v973 = vpop.f32.mrf.mxu0
    %v974 = vadd.f32 %v764, %v973
    %v975 = vpop.f32.mrf.mxu0
    %v976 = vpop.f32.mrf.mxu0
    %v977 = vadd.f32 %v764, %v976
    %v978 = vpop.f32.mrf.mxu0
    %979 = vmatprep.mubr.bf16.mxu0 0
    %980 = vmatmul.mubr.bf16.gmra.mxu0 %v807
    %v981 = vpop.f32.mrf.mxu0
    %v982 = vadd.f32 %v764, %v981
    %v983 = vpop.f32.mrf.mxu0
    %v984 = vpop.f32.mrf.mxu0
    %v985 = vadd.f32 %v764, %v984
    %v986 = vpop.f32.mrf.mxu0
    %987 = vmatprep.mubr.bf16.mxu0 0
    %988 = vmatmul.mubr.bf16.gmra.mxu0 %v810
    %v989 = vpop.f32.mrf.mxu0
    %v990 = vadd.f32 %v764, %v989
    %v991 = vpop.f32.mrf.mxu0
    %v992 = vpop.f32.mrf.mxu0
    %v993 = vadd.f32 %v764, %v992
    %v994 = vpop.f32.mrf.mxu0
    %995 = vmatprep.mubr.bf16.mxu0 0
    %996 = vmatmul.mubr.bf16.gmra.mxu0 %v813
    %v997 = vpop.f32.mrf.mxu0
    %v998 = vadd.f32 %v764, %v997
    %v999 = vpop.f32.mrf.mxu0
    %v1000 = vpop.f32.mrf.mxu0
    %v1001 = vadd.f32 %v764, %v1000
    %v1002 = vpop.f32.mrf.mxu0
    %1003 = vmatprep.mubr.bf16.mxu0 0
    %1004 = vmatmul.mubr.bf16.gmra.mxu0 %v816
    %v1005 = vpop.f32.mrf.mxu0
    %v1006 = vadd.f32 %v764, %v1005
    %v1007 = vpop.f32.mrf.mxu0
    %v1008 = vpop.f32.mrf.mxu0
    %v1009 = vadd.f32 %v764, %v1008
    %v1010 = vpop.f32.mrf.mxu0
    %1011 = vmatprep.mubr.bf16.mxu0 0
    %1012 = vmatmul.mubr.bf16.gmra.mxu0 %v819
    %v1013 = vpop.f32.mrf.mxu0
    %v1014 = vadd.f32 %v764, %v1013
    %v1015 = vpop.f32.mrf.mxu0
    %v1016 = vpop.f32.mrf.mxu0
    %v1017 = vadd.f32 %v764, %v1016
    %v1018 = vpop.f32.mrf.mxu0
    %1019 = vmatprep.mubr.bf16.mxu0 0
    %1020 = vmatmul.mubr.bf16.gmra.mxu0 %v822
    %v1021 = vpop.f32.mrf.mxu0
    %v1022 = vadd.f32 %v764, %v1021
    %v1023 = vpop.f32.mrf.mxu0
    %v1024 = vpop.f32.mrf.mxu0
    %v1025 = vadd.f32 %v764, %v1024
    %v1026 = vpop.f32.mrf.mxu0
    %1027 = vmatprep.mubr.bf16.mxu0 0
    %1028 = vmatmul.mubr.bf16.gmra.mxu0 %v825
    %v1029 = vpop.f32.mrf.mxu0
    %v1030 = vadd.f32 %v764, %v1029
    %v1031 = vpop.f32.mrf.mxu0
    %v1032 = vpop.f32.mrf.mxu0
    %v1033 = vadd.f32 %v764, %v1032
    %v1034 = vpop.f32.mrf.mxu0
    %1035 = vmatprep.mubr.bf16.mxu0 0
    %1036 = vmatmul.mubr.bf16.gmra.mxu0 %v828
    %v1037 = vpop.f32.mrf.mxu0
    %v1038 = vadd.f32 %v764, %v1037
    %v1039 = vpop.f32.mrf.mxu0
    %v1040 = vpop.f32.mrf.mxu0
    %v1041 = vadd.f32 %v764, %v1040
    %v1042 = vpop.f32.mrf.mxu0
    %1043 = vmatprep.mubr.bf16.mxu0 0
    %1044 = vmatmul.mubr.bf16.gmra.mxu0 %v831
    %v1045 = vpop.f32.mrf.mxu0
    %v1046 = vadd.f32 %v764, %v1045
    %v1047 = vpop.f32.mrf.mxu0
    %v1048 = vpop.f32.mrf.mxu0
    %v1049 = vadd.f32 %v764, %v1048
    %v1050 = vpop.f32.mrf.mxu0
    %1051 = vmatprep.mubr.bf16.mxu0 0
    %1052 = vmatmul.mubr.bf16.gmra.mxu0 %v834
    %v1053 = vpop.f32.mrf.mxu0
    %v1054 = vadd.f32 %v764, %v1053
    %v1055 = vpop.f32.mrf.mxu0
    %v1056 = vpop.f32.mrf.mxu0
    %v1057 = vadd.f32 %v764, %v1056
    %v1058 = vpop.f32.mrf.mxu0
    %1059 = vmatprep.mubr.bf16.mxu0 0
    %1060 = vmatmul.mubr.bf16.gmra.mxu0 %v837
    %v1061 = vpop.f32.mrf.mxu0
    %v1062 = vadd.f32 %v764, %v1061
    %v1063 = vpop.f32.mrf.mxu0
    %v1064 = vpop.f32.mrf.mxu0
    %v1065 = vadd.f32 %v764, %v1064
    %v1066 = vpop.f32.mrf.mxu0
    %1067 = vmatprep.mubr.bf16.mxu0 0
    %1068 = vmatmul.mubr.bf16.gmra.mxu0 %v840
    %v1069 = vpop.f32.mrf.mxu0
    %v1070 = vadd.f32 %v764, %v1069
    %v1071 = vpop.f32.mrf.mxu0
    %v1072 = vpop.f32.mrf.mxu0
    %v1073 = vadd.f32 %v764, %v1072
    %v1074 = vpop.f32.mrf.mxu0
    %1075 = vmatprep.mubr.bf16.mxu0 0
    %1076 = vmatmul.mubr.bf16.gmra.mxu0 %v843
    %v1077 = vpop.f32.mrf.mxu0
    %v1078 = vadd.f32 %v764, %v1077
    %v1079 = vpop.f32.mrf.mxu0
    %v1080 = vpop.f32.mrf.mxu0
    %v1081 = vadd.f32 %v764, %v1080
    %v1082 = vpop.f32.mrf.mxu0
    %1083 = vmatprep.mubr.bf16.mxu0 0
    %1084 = vmatmul.mubr.bf16.gmra.mxu0 %v846
    %v1085 = vpop.f32.mrf.mxu0
    %v1086 = vadd.f32 %v764, %v1085
    %v1087 = vpop.f32.mrf.mxu0
    %v1088 = vpop.f32.mrf.mxu0
    %v1089 = vadd.f32 %v764, %v1088
    %v1090 = vpop.f32.mrf.mxu0
    %1091 = vmatprep.mubr.bf16.mxu0 0
    %1092 = vmatmul.mubr.bf16.gmra.mxu0 %v849
    %v1093 = vpop.f32.mrf.mxu0
    %v1094 = vadd.f32 %v764, %v1093
    %v1095 = vpop.f32.mrf.mxu0
    %v1096 = vpop.f32.mrf.mxu0
    %v1097 = vadd.f32 %v764, %v1096
    %v1098 = vpop.f32.mrf.mxu0
    %1099 = vmatprep.mubr.bf16.mxu0 0
    %1100 = vmatmul.mubr.bf16.gmra.mxu0 %v852
    %v1101 = vpop.f32.mrf.mxu0
    %v1102 = vadd.f32 %v764, %v1101
    %v1103 = vpop.f32.mrf.mxu0
    %v1104 = vpop.f32.mrf.mxu0
    %v1105 = vadd.f32 %v764, %v1104
    %v1106 = vpop.f32.mrf.mxu0
    %1107 = vmatprep.mubr.bf16.mxu0 0
    %1108 = vmatmul.mubr.bf16.gmra.mxu0 %v855
    %v1109 = vpop.f32.mrf.mxu0
    %v1110 = vadd.f32 %v764, %v1109
    %v1111 = vpop.f32.mrf.mxu0
    %v1112 = vpop.f32.mrf.mxu0
    %v1113 = vadd.f32 %v764, %v1112
    %v1114 = vpop.f32.mrf.mxu0
    %1115 = vmatprep.mubr.bf16.mxu0 0
    %1116 = vmatmul.mubr.bf16.gmra.mxu0 %v858
    %v1117 = vpop.f32.mrf.mxu0
    %v1118 = vadd.f32 %v764, %v1117
    %v1119 = vpop.f32.mrf.mxu0
    %v1120 = vpop.f32.mrf.mxu0
    %v1121 = vadd.f32 %v764, %v1120
    %v1122 = vpop.f32.mrf.mxu0
    %1123 = vmatprep.mubr.bf16.mxu0 0
    %1124 = vmatmul.mubr.bf16.gmra.mxu0 %v861
    %v1125 = vpop.f32.mrf.mxu0
    %v1126 = vadd.f32 %v764, %v1125
    %v1127 = vpop.f32.mrf.mxu0
    %v1128 = vpop.f32.mrf.mxu0
    %v1129 = vadd.f32 %v764, %v1128
    %v1130 = vpop.f32.mrf.mxu0
    %1131 = vmatprep.mubr.bf16.mxu0 0
    %1132 = vmatmul.mubr.bf16.gmra.mxu0 %v864
    %v1133 = vpop.f32.mrf.mxu0
    %v1134 = vadd.f32 %v764, %v1133
    %v1135 = vpop.f32.mrf.mxu0
    %v1136 = vpop.f32.mrf.mxu0
    %v1137 = vadd.f32 %v764, %v1136
    %v1138 = vpop.f32.mrf.mxu0
    %1139 = vmatprep.mubr.bf16.mxu0 0
    %1140 = vmatmul.mubr.bf16.gmra.mxu0 %v867
    %v1141 = vpop.f32.mrf.mxu0
    %v1142 = vadd.f32 %v764, %v1141
    %v1143 = vpop.f32.mrf.mxu0
    %v1144 = vpop.f32.mrf.mxu0
    %v1145 = vadd.f32 %v764, %v1144
    %v1146 = vpop.f32.mrf.mxu0
    %1147 = vmatprep.mubr.bf16.mxu0 0
    %1148 = vmatmul.mubr.bf16.gmra.mxu0 %v870
    %v1149 = vpop.f32.mrf.mxu0
    %v1150 = vadd.f32 %v764, %v1149
    %v1151 = vpop.f32.mrf.mxu0
    %v1152 = vpop.f32.mrf.mxu0
    %v1153 = vadd.f32 %v764, %v1152
    %v1154 = vpop.f32.mrf.mxu0
    %1155 = vmatprep.mubr.bf16.mxu0 0
    %1156 = vmatmul.mubr.bf16.gmra.mxu0 %v873
    %v1157 = vpop.f32.mrf.mxu0
    %v1158 = vadd.f32 %v764, %v1157
    %v1159 = vpop.f32.mrf.mxu0
    %v1160 = vpop.f32.mrf.mxu0
    %v1161 = vadd.f32 %v764, %v1160
    %v1162 = vpop.f32.mrf.mxu0
    %1163 = vdwg.mxu0
    %v1164 = vmax.f32 %v910, 0.0
    %v1165 = vmax.f32 %v913, 0.0
    %v1166 = vmax.f32 %v918, 0.0
    %v1167 = vmax.f32 %v921, 0.0
    %v1168 = vmax.f32 %v926, 0.0
    %v1169 = vmax.f32 %v929, 0.0
    %v1170 = vmax.f32 %v934, 0.0
    %v1171 = vmax.f32 %v937, 0.0
    %v1172 = vmax.f32 %v942, 0.0
    %v1173 = vmax.f32 %v945, 0.0
    %v1174 = vmax.f32 %v950, 0.0
    %v1175 = vmax.f32 %v953, 0.0
    %v1176 = vmax.f32 %v958, 0.0
    %v1177 = vmax.f32 %v961, 0.0
    %v1178 = vmax.f32 %v966, 0.0
    %v1179 = vmax.f32 %v969, 0.0
    %v1180 = vmax.f32 %v974, 0.0
    %v1181 = vmax.f32 %v977, 0.0
    %v1182 = vmax.f32 %v982, 0.0
    %v1183 = vmax.f32 %v985, 0.0
    %v1184 = vmax.f32 %v990, 0.0
    %v1185 = vmax.f32 %v993, 0.0
    %v1186 = vmax.f32 %v998, 0.0
    %v1187 = vmax.f32 %v1001, 0.0
    %v1188 = vmax.f32 %v1006, 0.0
    %v1189 = vmax.f32 %v1009, 0.0
    %v1190 = vmax.f32 %v1014, 0.0
    %v1191 = vmax.f32 %v1017, 0.0
    %v1192 = vmax.f32 %v1022, 0.0
    %v1193 = vmax.f32 %v1025, 0.0
    %v1194 = vmax.f32 %v1030, 0.0
    %v1195 = vmax.f32 %v1033, 0.0
    %v1196 = vmax.f32 %v1038, 0.0
    %v1197 = vmax.f32 %v1041, 0.0
    %v1198 = vmax.f32 %v1046, 0.0
    %v1199 = vmax.f32 %v1049, 0.0
    %v1200 = vmax.f32 %v1054, 0.0
    %v1201 = vmax.f32 %v1057, 0.0
    %v1202 = vmax.f32 %v1062, 0.0
    %v1203 = vmax.f32 %v1065, 0.0
    %v1204 = vmax.f32 %v1070, 0.0
    %v1205 = vmax.f32 %v1073, 0.0
    %v1206 = vmax.f32 %v1078, 0.0
    %v1207 = vmax.f32 %v1081, 0.0
    %v1208 = vmax.f32 %v1086, 0.0
    %v1209 = vmax.f32 %v1089, 0.0
    %v1210 = vmax.f32 %v1094, 0.0
    %v1211 = vmax.f32 %v1097, 0.0
    %v1212 = vmax.f32 %v1102, 0.0
    %v1213 = vmax.f32 %v1105, 0.0
    %v1214 = vmax.f32 %v1110, 0.0
    %v1215 = vmax.f32 %v1113, 0.0
    %v1216 = vmax.f32 %v1118, 0.0
    %v1217 = vmax.f32 %v1121, 0.0
    %v1218 = vmax.f32 %v1126, 0.0
    %v1219 = vmax.f32 %v1129, 0.0
    %v1220 = vmax.f32 %v1134, 0.0
    %v1221 = vmax.f32 %v1137, 0.0
    %v1222 = vmax.f32 %v1142, 0.0
    %v1223 = vmax.f32 %v1145, 0.0
    %v1224 = vmax.f32 %v1150, 0.0
    %v1225 = vmax.f32 %v1153, 0.0
    %v1226 = vmax.f32 %v1158, 0.0
    %v1227 = vmax.f32 %v1161, 0.0
    %v1228 = vpack.c.bf16 %v1165, %v1164
    %v1229 = vpack.c.bf16 %v1167, %v1166
    %v1230 = vpack.c.bf16 %v1169, %v1168
    %v1231 = vpack.c.bf16 %v1171, %v1170
    %v1232 = vpack.c.bf16 %v1173, %v1172
    %v1233 = vpack.c.bf16 %v1175, %v1174
    %v1234 = vpack.c.bf16 %v1177, %v1176
    %v1235 = vpack.c.bf16 %v1179, %v1178
    %v1236 = vpack.c.bf16 %v1181, %v1180
    %v1237 = vpack.c.bf16 %v1183, %v1182
    %v1238 = vpack.c.bf16 %v1185, %v1184
    %v1239 = vpack.c.bf16 %v1187, %v1186
    %v1240 = vpack.c.bf16 %v1189, %v1188
    %v1241 = vpack.c.bf16 %v1191, %v1190
    %v1242 = vpack.c.bf16 %v1193, %v1192
    %v1243 = vpack.c.bf16 %v1195, %v1194
    %v1244 = vpack.c.bf16 %v1197, %v1196
    %v1245 = vpack.c.bf16 %v1199, %v1198
    %v1246 = vpack.c.bf16 %v1201, %v1200
    %v1247 = vpack.c.bf16 %v1203, %v1202
    %v1248 = vpack.c.bf16 %v1205, %v1204
    %v1249 = vpack.c.bf16 %v1207, %v1206
    %v1250 = vpack.c.bf16 %v1209, %v1208
    %v1251 = vpack.c.bf16 %v1211, %v1210
    %v1252 = vpack.c.bf16 %v1213, %v1212
    %v1253 = vpack.c.bf16 %v1215, %v1214
    %v1254 = vpack.c.bf16 %v1217, %v1216
    %v1255 = vpack.c.bf16 %v1219, %v1218
    %v1256 = vpack.c.bf16 %v1221, %v1220
    %v1257 = vpack.c.bf16 %v1223, %v1222
    %v1258 = vpack.c.bf16 %v1225, %v1224
    %v1259 = vpack.c.bf16 %v1227, %v1226
    %v1260 = vld [vmem:[%s5] sm:$0xf]
    %v1261 = vld [vmem:[%s5 + $0x4] sm:$0xf]
    %v1262 = vld [vmem:[%s5 + $0x8] sm:$0xf]
    %v1263 = vld [vmem:[%s5 + $0xc] sm:$0xf]
    %v1264 = vld [vmem:[%s5 + $0x10] sm:$0xf]
    %v1265 = vld [vmem:[%s5 + $0x14] sm:$0xf]
    %v1266 = vld [vmem:[%s5 + $0x18] sm:$0xf]
    %v1267 = vld [vmem:[%s5 + $0x1c] sm:$0xf]
    %v1268 = vld [vmem:[%s6] sm:$0x1]
    %v1270 = vlaneseq
    %v1271 = vshrl.u32 %v1270, 7
    %v1272 = vsub.s32 0, %v1271
    %v1273 = vrot.slane %v1268, %v1272
    %v1283 = vunpack.c.l.b16 %v1260
    %v1284 = vunpack.c.l.b16 %v1261
    %v1285 = vunpack.c.l.b16 %v1262
    %v1286 = vunpack.c.l.b16 %v1263
    %v1287 = vunpack.c.l.b16 %v1264
    %v1288 = vunpack.c.l.b16 %v1265
    %v1289 = vunpack.c.l.b16 %v1266
    %v1290 = vunpack.c.l.b16 %v1267
    %v1291 = vpack.c.b16 %v1284, %v1283
    %v1292 = vpack.c.b16 %v1286, %v1285
    %v1293 = vpack.c.b16 %v1288, %v1287
    %v1294 = vpack.c.b16 %v1290, %v1289
    %vm1299 = vcmask 523264
    %v1301 = vsel %vm1299, %v1228, 0
    %v1304 = vsel %vm1299, %v1229, 0
    %v1307 = vsel %vm1299, %v1230, 0
    %v1310 = vsel %vm1299, %v1231, 0
    %v1313 = vsel %vm1299, %v1232, 0
    %v1316 = vsel %vm1299, %v1233, 0
    %v1319 = vsel %vm1299, %v1234, 0
    %v1322 = vsel %vm1299, %v1235, 0
    %v1325 = vsel %vm1299, %v1236, 0
    %v1328 = vsel %vm1299, %v1237, 0
    %v1331 = vsel %vm1299, %v1238, 0
    %v1334 = vsel %vm1299, %v1239, 0
    %v1337 = vsel %vm1299, %v1240, 0
    %v1340 = vsel %vm1299, %v1241, 0
    %v1343 = vsel %vm1299, %v1242, 0
    %v1346 = vsel %vm1299, %v1243, 0
    %v1349 = vsel %vm1299, %v1244, 0
    %v1352 = vsel %vm1299, %v1245, 0
    %v1355 = vsel %vm1299, %v1246, 0
    %v1358 = vsel %vm1299, %v1247, 0
    %v1361 = vsel %vm1299, %v1248, 0
    %v1364 = vsel %vm1299, %v1249, 0
    %v1367 = vsel %vm1299, %v1250, 0
    %v1370 = vsel %vm1299, %v1251, 0
    %v1373 = vsel %vm1299, %v1252, 0
    %v1376 = vsel %vm1299, %v1253, 0
    %v1379 = vsel %vm1299, %v1254, 0
    %v1382 = vsel %vm1299, %v1255, 0
    %v1385 = vsel %vm1299, %v1256, 0
    %v1388 = vsel %vm1299, %v1257, 0
    %v1391 = vsel %vm1299, %v1258, 0
    %v1394 = vsel %vm1299, %v1259, 0
    %1396 = vmatprep.subr.bf16.mxu0 0
    %1397 = vmatpush1.bf16.msra.mxu0 0
    %1398 = vmatprep.subr.bf16.mxu0 0
    %1399 = vmatpush1.bf16.msra.mxu0 0
    %1400 = vmatprep.subr.bf16.mxu0 0
    %1401 = vmatpush1.bf16.msra.mxu0 0
    %1402 = vmatprep.subr.bf16.mxu0 0
    %1403 = vmatpush1.bf16.msra.mxu0 0
    %1404 = vmatprep.subr.bf16.mxu0 0
    %1405 = vmatpush1.bf16.msra.mxu0 %v1294
    %1406 = vmatprep.subr.bf16.mxu0 0
    %1407 = vmatpush1.bf16.msra.mxu0 %v1293
    %1408 = vmatprep.subr.bf16.mxu0 0
    %1409 = vmatpush1.bf16.msra.mxu0 %v1292
    %1410 = vmatprep.subr.bf16.mxu0 0
    %1411 = vmatpush1.bf16.msra.mxu0 %v1291
    %1412 = vmatprep.subr.bf16.mxu0 0
    %1413 = vmatpush2.bf16.msra.mxu0 0
    %1414 = vmatprep.subr.bf16.mxu0 0
    %1415 = vmatpush2.bf16.msra.mxu0 0
    %1416 = vmatprep.subr.bf16.mxu0 0
    %1417 = vmatpush2.bf16.msra.mxu0 0
    %1418 = vmatprep.subr.bf16.mxu0 0
    %1419 = vmatpush2.bf16.msra.mxu0 0
    %1420 = vmatprep.subr.bf16.mxu0 0
    %1421 = vmatpush2.bf16.msra.mxu0 0
    %1422 = vmatprep.subr.bf16.mxu0 0
    %1423 = vmatpush2.bf16.msra.mxu0 0
    %1424 = vmatprep.subr.bf16.mxu0 0
    %1425 = vmatpush2.bf16.msra.mxu0 0
    %1426 = vmatprep.subr.bf16.mxu0 0
    %1427 = vmatpush2.bf16.msra.mxu0 0
    %1428 = vmatprep.mubr.bf16.mxu0 0
    %1429 = vmatmul.mubr.bf16.gmra.mxu0 %v1301
    %v1430 = vpop.f32.mrf.mxu0
    %v1431 = vadd.f32 %v1273, %v1430
    %v1432 = vpop.f32.mrf.mxu0
    %v1433 = vpop.f32.mrf.mxu0
    %v1434 = vadd.f32 %v1273, %v1433
    %v1435 = vpop.f32.mrf.mxu0
    %1436 = vmatprep.mubr.bf16.mxu0 0
    %1437 = vmatmul.mubr.bf16.gmra.mxu0 %v1304
    %v1438 = vpop.f32.mrf.mxu0
    %v1439 = vadd.f32 %v1273, %v1438
    %v1440 = vpop.f32.mrf.mxu0
    %v1441 = vpop.f32.mrf.mxu0
    %v1442 = vadd.f32 %v1273, %v1441
    %v1443 = vpop.f32.mrf.mxu0
    %1444 = vmatprep.mubr.bf16.mxu0 0
    %1445 = vmatmul.mubr.bf16.gmra.mxu0 %v1307
    %v1446 = vpop.f32.mrf.mxu0
    %v1447 = vadd.f32 %v1273, %v1446
    %v1448 = vpop.f32.mrf.mxu0
    %v1449 = vpop.f32.mrf.mxu0
    %v1450 = vadd.f32 %v1273, %v1449
    %v1451 = vpop.f32.mrf.mxu0
    %1452 = vmatprep.mubr.bf16.mxu0 0
    %1453 = vmatmul.mubr.bf16.gmra.mxu0 %v1310
    %v1454 = vpop.f32.mrf.mxu0
    %v1455 = vadd.f32 %v1273, %v1454
    %v1456 = vpop.f32.mrf.mxu0
    %v1457 = vpop.f32.mrf.mxu0
    %v1458 = vadd.f32 %v1273, %v1457
    %v1459 = vpop.f32.mrf.mxu0
    %1460 = vmatprep.mubr.bf16.mxu0 0
    %1461 = vmatmul.mubr.bf16.gmra.mxu0 %v1313
    %v1462 = vpop.f32.mrf.mxu0
    %v1463 = vadd.f32 %v1273, %v1462
    %v1464 = vpop.f32.mrf.mxu0
    %v1465 = vpop.f32.mrf.mxu0
    %v1466 = vadd.f32 %v1273, %v1465
    %v1467 = vpop.f32.mrf.mxu0
    %1468 = vmatprep.mubr.bf16.mxu0 0
    %1469 = vmatmul.mubr.bf16.gmra.mxu0 %v1316
    %v1470 = vpop.f32.mrf.mxu0
    %v1471 = vadd.f32 %v1273, %v1470
    %v1472 = vpop.f32.mrf.mxu0
    %v1473 = vpop.f32.mrf.mxu0
    %v1474 = vadd.f32 %v1273, %v1473
    %v1475 = vpop.f32.mrf.mxu0
    %1476 = vmatprep.mubr.bf16.mxu0 0
    %1477 = vmatmul.mubr.bf16.gmra.mxu0 %v1319
    %v1478 = vpop.f32.mrf.mxu0
    %v1479 = vadd.f32 %v1273, %v1478
    %v1480 = vpop.f32.mrf.mxu0
    %v1481 = vpop.f32.mrf.mxu0
    %v1482 = vadd.f32 %v1273, %v1481
    %v1483 = vpop.f32.mrf.mxu0
    %1484 = vmatprep.mubr.bf16.mxu0 0
    %1485 = vmatmul.mubr.bf16.gmra.mxu0 %v1322
    %v1486 = vpop.f32.mrf.mxu0
    %v1487 = vadd.f32 %v1273, %v1486
    %v1488 = vpop.f32.mrf.mxu0
    %v1489 = vpop.f32.mrf.mxu0
    %v1490 = vadd.f32 %v1273, %v1489
    %v1491 = vpop.f32.mrf.mxu0
    %1492 = vmatprep.mubr.bf16.mxu0 0
    %1493 = vmatmul.mubr.bf16.gmra.mxu0 %v1325
    %v1494 = vpop.f32.mrf.mxu0
    %v1495 = vadd.f32 %v1273, %v1494
    %v1496 = vpop.f32.mrf.mxu0
    %v1497 = vpop.f32.mrf.mxu0
    %v1498 = vadd.f32 %v1273, %v1497
    %v1499 = vpop.f32.mrf.mxu0
    %1500 = vmatprep.mubr.bf16.mxu0 0
    %1501 = vmatmul.mubr.bf16.gmra.mxu0 %v1328
    %v1502 = vpop.f32.mrf.mxu0
    %v1503 = vadd.f32 %v1273, %v1502
    %v1504 = vpop.f32.mrf.mxu0
    %v1505 = vpop.f32.mrf.mxu0
    %v1506 = vadd.f32 %v1273, %v1505
    %v1507 = vpop.f32.mrf.mxu0
    %1508 = vmatprep.mubr.bf16.mxu0 0
    %1509 = vmatmul.mubr.bf16.gmra.mxu0 %v1331
    %v1510 = vpop.f32.mrf.mxu0
    %v1511 = vadd.f32 %v1273, %v1510
    %v1512 = vpop.f32.mrf.mxu0
    %v1513 = vpop.f32.mrf.mxu0
    %v1514 = vadd.f32 %v1273, %v1513
    %v1515 = vpop.f32.mrf.mxu0
    %1516 = vmatprep.mubr.bf16.mxu0 0
    %1517 = vmatmul.mubr.bf16.gmra.mxu0 %v1334
    %v1518 = vpop.f32.mrf.mxu0
    %v1519 = vadd.f32 %v1273, %v1518
    %v1520 = vpop.f32.mrf.mxu0
    %v1521 = vpop.f32.mrf.mxu0
    %v1522 = vadd.f32 %v1273, %v1521
    %v1523 = vpop.f32.mrf.mxu0
    %1524 = vmatprep.mubr.bf16.mxu0 0
    %1525 = vmatmul.mubr.bf16.gmra.mxu0 %v1337
    %v1526 = vpop.f32.mrf.mxu0
    %v1527 = vadd.f32 %v1273, %v1526
    %v1528 = vpop.f32.mrf.mxu0
    %v1529 = vpop.f32.mrf.mxu0
    %v1530 = vadd.f32 %v1273, %v1529
    %v1531 = vpop.f32.mrf.mxu0
    %1532 = vmatprep.mubr.bf16.mxu0 0
    %1533 = vmatmul.mubr.bf16.gmra.mxu0 %v1340
    %v1534 = vpop.f32.mrf.mxu0
    %v1535 = vadd.f32 %v1273, %v1534
    %v1536 = vpop.f32.mrf.mxu0
    %v1537 = vpop.f32.mrf.mxu0
    %v1538 = vadd.f32 %v1273, %v1537
    %v1539 = vpop.f32.mrf.mxu0
    %1540 = vmatprep.mubr.bf16.mxu0 0
    %1541 = vmatmul.mubr.bf16.gmra.mxu0 %v1343
    %v1542 = vpop.f32.mrf.mxu0
    %v1543 = vadd.f32 %v1273, %v1542
    %v1544 = vpop.f32.mrf.mxu0
    %v1545 = vpop.f32.mrf.mxu0
    %v1546 = vadd.f32 %v1273, %v1545
    %v1547 = vpop.f32.mrf.mxu0
    %1548 = vmatprep.mubr.bf16.mxu0 0
    %1549 = vmatmul.mubr.bf16.gmra.mxu0 %v1346
    %v1550 = vpop.f32.mrf.mxu0
    %v1551 = vadd.f32 %v1273, %v1550
    %v1552 = vpop.f32.mrf.mxu0
    %v1553 = vpop.f32.mrf.mxu0
    %v1554 = vadd.f32 %v1273, %v1553
    %v1555 = vpop.f32.mrf.mxu0
    %1556 = vmatprep.mubr.bf16.mxu0 0
    %1557 = vmatmul.mubr.bf16.gmra.mxu0 %v1349
    %v1558 = vpop.f32.mrf.mxu0
    %v1559 = vadd.f32 %v1273, %v1558
    %v1560 = vpop.f32.mrf.mxu0
    %v1561 = vpop.f32.mrf.mxu0
    %v1562 = vadd.f32 %v1273, %v1561
    %v1563 = vpop.f32.mrf.mxu0
    %1564 = vmatprep.mubr.bf16.mxu0 0
    %1565 = vmatmul.mubr.bf16.gmra.mxu0 %v1352
    %v1566 = vpop.f32.mrf.mxu0
    %v1567 = vadd.f32 %v1273, %v1566
    %v1568 = vpop.f32.mrf.mxu0
    %v1569 = vpop.f32.mrf.mxu0
    %v1570 = vadd.f32 %v1273, %v1569
    %v1571 = vpop.f32.mrf.mxu0
    %1572 = vmatprep.mubr.bf16.mxu0 0
    %1573 = vmatmul.mubr.bf16.gmra.mxu0 %v1355
    %v1574 = vpop.f32.mrf.mxu0
    %v1575 = vadd.f32 %v1273, %v1574
    %v1576 = vpop.f32.mrf.mxu0
    %v1577 = vpop.f32.mrf.mxu0
    %v1578 = vadd.f32 %v1273, %v1577
    %v1579 = vpop.f32.mrf.mxu0
    %1580 = vmatprep.mubr.bf16.mxu0 0
    %1581 = vmatmul.mubr.bf16.gmra.mxu0 %v1358
    %v1582 = vpop.f32.mrf.mxu0
    %v1583 = vadd.f32 %v1273, %v1582
    %v1584 = vpop.f32.mrf.mxu0
    %v1585 = vpop.f32.mrf.mxu0
    %v1586 = vadd.f32 %v1273, %v1585
    %v1587 = vpop.f32.mrf.mxu0
    %1588 = vmatprep.mubr.bf16.mxu0 0
    %1589 = vmatmul.mubr.bf16.gmra.mxu0 %v1361
    %v1590 = vpop.f32.mrf.mxu0
    %v1591 = vadd.f32 %v1273, %v1590
    %v1592 = vpop.f32.mrf.mxu0
    %v1593 = vpop.f32.mrf.mxu0
    %v1594 = vadd.f32 %v1273, %v1593
    %v1595 = vpop.f32.mrf.mxu0
    %1596 = vmatprep.mubr.bf16.mxu0 0
    %1597 = vmatmul.mubr.bf16.gmra.mxu0 %v1364
    %v1598 = vpop.f32.mrf.mxu0
    %v1599 = vadd.f32 %v1273, %v1598
    %v1600 = vpop.f32.mrf.mxu0
    %v1601 = vpop.f32.mrf.mxu0
    %v1602 = vadd.f32 %v1273, %v1601
    %v1603 = vpop.f32.mrf.mxu0
    %1604 = vmatprep.mubr.bf16.mxu0 0
    %1605 = vmatmul.mubr.bf16.gmra.mxu0 %v1367
    %v1606 = vpop.f32.mrf.mxu0
    %v1607 = vadd.f32 %v1273, %v1606
    %v1608 = vpop.f32.mrf.mxu0
    %v1609 = vpop.f32.mrf.mxu0
    %v1610 = vadd.f32 %v1273, %v1609
    %v1611 = vpop.f32.mrf.mxu0
    %1612 = vmatprep.mubr.bf16.mxu0 0
    %1613 = vmatmul.mubr.bf16.gmra.mxu0 %v1370
    %v1614 = vpop.f32.mrf.mxu0
    %v1615 = vadd.f32 %v1273, %v1614
    %v1616 = vpop.f32.mrf.mxu0
    %v1617 = vpop.f32.mrf.mxu0
    %v1618 = vadd.f32 %v1273, %v1617
    %v1619 = vpop.f32.mrf.mxu0
    %1620 = vmatprep.mubr.bf16.mxu0 0
    %1621 = vmatmul.mubr.bf16.gmra.mxu0 %v1373
    %v1622 = vpop.f32.mrf.mxu0
    %v1623 = vadd.f32 %v1273, %v1622
    %v1624 = vpop.f32.mrf.mxu0
    %v1625 = vpop.f32.mrf.mxu0
    %v1626 = vadd.f32 %v1273, %v1625
    %v1627 = vpop.f32.mrf.mxu0
    %1628 = vmatprep.mubr.bf16.mxu0 0
    %1629 = vmatmul.mubr.bf16.gmra.mxu0 %v1376
    %v1630 = vpop.f32.mrf.mxu0
    %v1631 = vadd.f32 %v1273, %v1630
    %v1632 = vpop.f32.mrf.mxu0
    %v1633 = vpop.f32.mrf.mxu0
    %v1634 = vadd.f32 %v1273, %v1633
    %v1635 = vpop.f32.mrf.mxu0
    %1636 = vmatprep.mubr.bf16.mxu0 0
    %1637 = vmatmul.mubr.bf16.gmra.mxu0 %v1379
    %v1638 = vpop.f32.mrf.mxu0
    %v1639 = vadd.f32 %v1273, %v1638
    %v1640 = vpop.f32.mrf.mxu0
    %v1641 = vpop.f32.mrf.mxu0
    %v1642 = vadd.f32 %v1273, %v1641
    %v1643 = vpop.f32.mrf.mxu0
    %1644 = vmatprep.mubr.bf16.mxu0 0
    %1645 = vmatmul.mubr.bf16.gmra.mxu0 %v1382
    %v1646 = vpop.f32.mrf.mxu0
    %v1647 = vadd.f32 %v1273, %v1646
    %v1648 = vpop.f32.mrf.mxu0
    %v1649 = vpop.f32.mrf.mxu0
    %v1650 = vadd.f32 %v1273, %v1649
    %v1651 = vpop.f32.mrf.mxu0
    %1652 = vmatprep.mubr.bf16.mxu0 0
    %1653 = vmatmul.mubr.bf16.gmra.mxu0 %v1385
    %v1654 = vpop.f32.mrf.mxu0
    %v1655 = vadd.f32 %v1273, %v1654
    %v1656 = vpop.f32.mrf.mxu0
    %v1657 = vpop.f32.mrf.mxu0
    %v1658 = vadd.f32 %v1273, %v1657
    %v1659 = vpop.f32.mrf.mxu0
    %1660 = vmatprep.mubr.bf16.mxu0 0
    %1661 = vmatmul.mubr.bf16.gmra.mxu0 %v1388
    %v1662 = vpop.f32.mrf.mxu0
    %v1663 = vadd.f32 %v1273, %v1662
    %v1664 = vpop.f32.mrf.mxu0
    %v1665 = vpop.f32.mrf.mxu0
    %v1666 = vadd.f32 %v1273, %v1665
    %v1667 = vpop.f32.mrf.mxu0
    %1668 = vmatprep.mubr.bf16.mxu0 0
    %1669 = vmatmul.mubr.bf16.gmra.mxu0 %v1391
    %v1670 = vpop.f32.mrf.mxu0
    %v1671 = vadd.f32 %v1273, %v1670
    %v1672 = vpop.f32.mrf.mxu0
    %v1673 = vpop.f32.mrf.mxu0
    %v1674 = vadd.f32 %v1273, %v1673
    %v1675 = vpop.f32.mrf.mxu0
    %1676 = vmatprep.mubr.bf16.mxu0 0
    %1677 = vmatmul.mubr.bf16.gmra.mxu0 %v1394
    %v1678 = vpop.f32.mrf.mxu0
    %v1679 = vadd.f32 %v1273, %v1678
    %v1680 = vpop.f32.mrf.mxu0
    %v1681 = vpop.f32.mrf.mxu0
    %v1682 = vadd.f32 %v1273, %v1681
    %v1683 = vpop.f32.mrf.mxu0
    %1684 = vdwg.mxu0
    %v1685 = vadd.f32 %v1431, %v659
    %v1686 = vadd.f32 %v1434, %v660
    %v1687 = vadd.f32 %v1439, %v661
    %v1688 = vadd.f32 %v1442, %v662
    %v1689 = vadd.f32 %v1447, %v663
    %v1690 = vadd.f32 %v1450, %v664
    %v1691 = vadd.f32 %v1455, %v665
    %v1692 = vadd.f32 %v1458, %v666
    %v1693 = vadd.f32 %v1463, %v667
    %v1694 = vadd.f32 %v1466, %v668
    %v1695 = vadd.f32 %v1471, %v669
    %v1696 = vadd.f32 %v1474, %v670
    %v1697 = vadd.f32 %v1479, %v671
    %v1698 = vadd.f32 %v1482, %v672
    %v1699 = vadd.f32 %v1487, %v673
    %v1700 = vadd.f32 %v1490, %v674
    %v1701 = vadd.f32 %v1495, %v675
    %v1702 = vadd.f32 %v1498, %v676
    %v1703 = vadd.f32 %v1503, %v677
    %v1704 = vadd.f32 %v1506, %v678
    %v1705 = vadd.f32 %v1511, %v679
    %v1706 = vadd.f32 %v1514, %v680
    %v1707 = vadd.f32 %v1519, %v681
    %v1708 = vadd.f32 %v1522, %v682
    %v1709 = vadd.f32 %v1527, %v683
    %v1710 = vadd.f32 %v1530, %v684
    %v1711 = vadd.f32 %v1535, %v685
    %v1712 = vadd.f32 %v1538, %v686
    %v1713 = vadd.f32 %v1543, %v687
    %v1714 = vadd.f32 %v1546, %v688
    %v1715 = vadd.f32 %v1551, %v689
    %v1716 = vadd.f32 %v1554, %v690
    %v1717 = vadd.f32 %v1559, %v691
    %v1718 = vadd.f32 %v1562, %v692
    %v1719 = vadd.f32 %v1567, %v693
    %v1720 = vadd.f32 %v1570, %v694
    %v1721 = vadd.f32 %v1575, %v695
    %v1722 = vadd.f32 %v1578, %v696
    %v1723 = vadd.f32 %v1583, %v697
    %v1724 = vadd.f32 %v1586, %v698
    %v1725 = vadd.f32 %v1591, %v699
    %v1726 = vadd.f32 %v1594, %v700
    %v1727 = vadd.f32 %v1599, %v701
    %v1728 = vadd.f32 %v1602, %v702
    %v1729 = vadd.f32 %v1607, %v703
    %v1730 = vadd.f32 %v1610, %v704
    %v1731 = vadd.f32 %v1615, %v705
    %v1732 = vadd.f32 %v1618, %v706
    %v1733 = vadd.f32 %v1623, %v707
    %v1734 = vadd.f32 %v1626, %v708
    %v1735 = vadd.f32 %v1631, %v709
    %v1736 = vadd.f32 %v1634, %v710
    %v1737 = vadd.f32 %v1639, %v711
    %v1738 = vadd.f32 %v1642, %v712
    %v1739 = vadd.f32 %v1647, %v713
    %v1740 = vadd.f32 %v1650, %v714
    %v1741 = vadd.f32 %v1655, %v715
    %v1742 = vadd.f32 %v1658, %v716
    %v1743 = vadd.f32 %v1663, %v717
    %v1744 = vadd.f32 %v1666, %v718
    %v1745 = vadd.f32 %v1671, %v719
    %v1746 = vadd.f32 %v1674, %v720
    %v1747 = vadd.f32 %v1679, %v721
    %v1748 = vadd.f32 %v1682, %v722
    %v1749 = vmax.f32 %v1685, 0.0
    %v1750 = vmax.f32 %v1686, 0.0
    %v1751 = vmax.f32 %v1687, 0.0
    %v1752 = vmax.f32 %v1688, 0.0
    %v1753 = vmax.f32 %v1689, 0.0
    %v1754 = vmax.f32 %v1690, 0.0
    %v1755 = vmax.f32 %v1691, 0.0
    %v1756 = vmax.f32 %v1692, 0.0
    %v1757 = vmax.f32 %v1693, 0.0
    %v1758 = vmax.f32 %v1694, 0.0
    %v1759 = vmax.f32 %v1695, 0.0
    %v1760 = vmax.f32 %v1696, 0.0
    %v1761 = vmax.f32 %v1697, 0.0
    %v1762 = vmax.f32 %v1698, 0.0
    %v1763 = vmax.f32 %v1699, 0.0
    %v1764 = vmax.f32 %v1700, 0.0
    %v1765 = vmax.f32 %v1701, 0.0
    %v1766 = vmax.f32 %v1702, 0.0
    %v1767 = vmax.f32 %v1703, 0.0
    %v1768 = vmax.f32 %v1704, 0.0
    %v1769 = vmax.f32 %v1705, 0.0
    %v1770 = vmax.f32 %v1706, 0.0
    %v1771 = vmax.f32 %v1707, 0.0
    %v1772 = vmax.f32 %v1708, 0.0
    %v1773 = vmax.f32 %v1709, 0.0
    %v1774 = vmax.f32 %v1710, 0.0
    %v1775 = vmax.f32 %v1711, 0.0
    %v1776 = vmax.f32 %v1712, 0.0
    %v1777 = vmax.f32 %v1713, 0.0
    %v1778 = vmax.f32 %v1714, 0.0
    %v1779 = vmax.f32 %v1715, 0.0
    %v1780 = vmax.f32 %v1716, 0.0
    %v1781 = vmax.f32 %v1717, 0.0
    %v1782 = vmax.f32 %v1718, 0.0
    %v1783 = vmax.f32 %v1719, 0.0
    %v1784 = vmax.f32 %v1720, 0.0
    %v1785 = vmax.f32 %v1721, 0.0
    %v1786 = vmax.f32 %v1722, 0.0
    %v1787 = vmax.f32 %v1723, 0.0
    %v1788 = vmax.f32 %v1724, 0.0
    %v1789 = vmax.f32 %v1725, 0.0
    %v1790 = vmax.f32 %v1726, 0.0
    %v1791 = vmax.f32 %v1727, 0.0
    %v1792 = vmax.f32 %v1728, 0.0
    %v1793 = vmax.f32 %v1729, 0.0
    %v1794 = vmax.f32 %v1730, 0.0
    %v1795 = vmax.f32 %v1731, 0.0
    %v1796 = vmax.f32 %v1732, 0.0
    %v1797 = vmax.f32 %v1733, 0.0
    %v1798 = vmax.f32 %v1734, 0.0
    %v1799 = vmax.f32 %v1735, 0.0
    %v1800 = vmax.f32 %v1736, 0.0
    %v1801 = vmax.f32 %v1737, 0.0
    %v1802 = vmax.f32 %v1738, 0.0
    %v1803 = vmax.f32 %v1739, 0.0
    %v1804 = vmax.f32 %v1740, 0.0
    %v1805 = vmax.f32 %v1741, 0.0
    %v1806 = vmax.f32 %v1742, 0.0
    %v1807 = vmax.f32 %v1743, 0.0
    %v1808 = vmax.f32 %v1744, 0.0
    %v1809 = vmax.f32 %v1745, 0.0
    %v1810 = vmax.f32 %v1746, 0.0
    %v1811 = vmax.f32 %v1747, 0.0
    %v1812 = vmax.f32 %v1748, 0.0
    %v1813 = vpack.c.bf16 %v1750, %v1749
    %v1814 = vpack.c.bf16 %v1752, %v1751
    %v1815 = vpack.c.bf16 %v1754, %v1753
    %v1816 = vpack.c.bf16 %v1756, %v1755
    %v1817 = vpack.c.bf16 %v1758, %v1757
    %v1818 = vpack.c.bf16 %v1760, %v1759
    %v1819 = vpack.c.bf16 %v1762, %v1761
    %v1820 = vpack.c.bf16 %v1764, %v1763
    %v1821 = vpack.c.bf16 %v1766, %v1765
    %v1822 = vpack.c.bf16 %v1768, %v1767
    %v1823 = vpack.c.bf16 %v1770, %v1769
    %v1824 = vpack.c.bf16 %v1772, %v1771
    %v1825 = vpack.c.bf16 %v1774, %v1773
    %v1826 = vpack.c.bf16 %v1776, %v1775
    %v1827 = vpack.c.bf16 %v1778, %v1777
    %v1828 = vpack.c.bf16 %v1780, %v1779
    %v1829 = vpack.c.bf16 %v1782, %v1781
    %v1830 = vpack.c.bf16 %v1784, %v1783
    %v1831 = vpack.c.bf16 %v1786, %v1785
    %v1832 = vpack.c.bf16 %v1788, %v1787
    %v1833 = vpack.c.bf16 %v1790, %v1789
    %v1834 = vpack.c.bf16 %v1792, %v1791
    %v1835 = vpack.c.bf16 %v1794, %v1793
    %v1836 = vpack.c.bf16 %v1796, %v1795
    %v1837 = vpack.c.bf16 %v1798, %v1797
    %v1838 = vpack.c.bf16 %v1800, %v1799
    %v1839 = vpack.c.bf16 %v1802, %v1801
    %v1840 = vpack.c.bf16 %v1804, %v1803
    %v1841 = vpack.c.bf16 %v1806, %v1805
    %v1842 = vpack.c.bf16 %v1808, %v1807
    %v1843 = vpack.c.bf16 %v1810, %v1809
    %v1844 = vpack.c.bf16 %v1812, %v1811
    %v1845 = vld [vmem:[%s7] sm:$0xf]
    %v1846 = vld [vmem:[%s7 + $0x4] sm:$0xf]
    %v1847 = vld [vmem:[%s7 + $0x8] sm:$0xf]
    %v1848 = vld [vmem:[%s7 + $0xc] sm:$0xf]
    %v1849 = vld [vmem:[%s8] sm:$0x1]
    %v1851 = vlaneseq
    %v1852 = vshrl.u32 %v1851, 7
    %v1853 = vsub.s32 0, %v1852
    %v1854 = vrot.slane %v1849, %v1853
    %v1860 = vunpack.c.l.b16 %v1845
    %v1861 = vunpack.c.l.b16 %v1846
    %v1862 = vunpack.c.l.b16 %v1847
    %v1863 = vunpack.c.l.b16 %v1848
    %v1864 = vpack.c.b16 %v1861, %v1860
    %v1865 = vpack.c.b16 %v1863, %v1862
    %v1869 = vsel %vm778, %v1813, 0
    %v1872 = vsel %vm778, %v1814, 0
    %v1875 = vsel %vm778, %v1815, 0
    %v1878 = vsel %vm778, %v1816, 0
    %v1881 = vsel %vm778, %v1817, 0
    %v1884 = vsel %vm778, %v1818, 0
    %v1887 = vsel %vm778, %v1819, 0
    %v1890 = vsel %vm778, %v1820, 0
    %v1893 = vsel %vm778, %v1821, 0
    %v1896 = vsel %vm778, %v1822, 0
    %v1899 = vsel %vm778, %v1823, 0
    %v1902 = vsel %vm778, %v1824, 0
    %v1905 = vsel %vm778, %v1825, 0
    %v1908 = vsel %vm778, %v1826, 0
    %v1911 = vsel %vm778, %v1827, 0
    %v1914 = vsel %vm778, %v1828, 0
    %v1917 = vsel %vm778, %v1829, 0
    %v1920 = vsel %vm778, %v1830, 0
    %v1923 = vsel %vm778, %v1831, 0
    %v1926 = vsel %vm778, %v1832, 0
    %v1929 = vsel %vm778, %v1833, 0
    %v1932 = vsel %vm778, %v1834, 0
    %v1935 = vsel %vm778, %v1835, 0
    %v1938 = vsel %vm778, %v1836, 0
    %v1941 = vsel %vm778, %v1837, 0
    %v1944 = vsel %vm778, %v1838, 0
    %v1947 = vsel %vm778, %v1839, 0
    %v1950 = vsel %vm778, %v1840, 0
    %v1953 = vsel %vm778, %v1841, 0
    %v1956 = vsel %vm778, %v1842, 0
    %v1959 = vsel %vm778, %v1843, 0
    %v1962 = vsel %vm778, %v1844, 0
    %1964 = vmatprep.subr.bf16.mxu0 0
    %1965 = vmatpush1.bf16.msra.mxu0 0
    %1966 = vmatprep.subr.bf16.mxu0 0
    %1967 = vmatpush1.bf16.msra.mxu0 0
    %1968 = vmatprep.subr.bf16.mxu0 0
    %1969 = vmatpush1.bf16.msra.mxu0 0
    %1970 = vmatprep.subr.bf16.mxu0 0
    %1971 = vmatpush1.bf16.msra.mxu0 0
    %1972 = vmatprep.subr.bf16.mxu0 0
    %1973 = vmatpush1.bf16.msra.mxu0 0
    %1974 = vmatprep.subr.bf16.mxu0 0
    %1975 = vmatpush1.bf16.msra.mxu0 0
    %1976 = vmatprep.subr.bf16.mxu0 0
    %1977 = vmatpush1.bf16.msra.mxu0 %v1865
    %1978 = vmatprep.subr.bf16.mxu0 0
    %1979 = vmatpush1.bf16.msra.mxu0 %v1864
    %1980 = vmatprep.subr.bf16.mxu0 0
    %1981 = vmatpush2.bf16.msra.mxu0 0
    %1982 = vmatprep.subr.bf16.mxu0 0
    %1983 = vmatpush2.bf16.msra.mxu0 0
    %1984 = vmatprep.subr.bf16.mxu0 0
    %1985 = vmatpush2.bf16.msra.mxu0 0
    %1986 = vmatprep.subr.bf16.mxu0 0
    %1987 = vmatpush2.bf16.msra.mxu0 0
    %1988 = vmatprep.subr.bf16.mxu0 0
    %1989 = vmatpush2.bf16.msra.mxu0 0
    %1990 = vmatprep.subr.bf16.mxu0 0
    %1991 = vmatpush2.bf16.msra.mxu0 0
    %1992 = vmatprep.subr.bf16.mxu0 0
    %1993 = vmatpush2.bf16.msra.mxu0 0
    %1994 = vmatprep.subr.bf16.mxu0 0
    %1995 = vmatpush2.bf16.msra.mxu0 0
    %1996 = vmatprep.mubr.bf16.mxu0 0
    %1997 = vmatmul.mubr.bf16.gmra.mxu0 %v1869
    %v1998 = vpop.f32.mrf.mxu0
    %v1999 = vadd.f32 %v1854, %v1998
    %v2000 = vpop.f32.mrf.mxu0
    %v2001 = vpop.f32.mrf.mxu0
    %v2002 = vadd.f32 %v1854, %v2001
    %v2003 = vpop.f32.mrf.mxu0
    %2004 = vmatprep.mubr.bf16.mxu0 0
    %2005 = vmatmul.mubr.bf16.gmra.mxu0 %v1872
    %v2006 = vpop.f32.mrf.mxu0
    %v2007 = vadd.f32 %v1854, %v2006
    %v2008 = vpop.f32.mrf.mxu0
    %v2009 = vpop.f32.mrf.mxu0
    %v2010 = vadd.f32 %v1854, %v2009
    %v2011 = vpop.f32.mrf.mxu0
    %2012 = vmatprep.mubr.bf16.mxu0 0
    %2013 = vmatmul.mubr.bf16.gmra.mxu0 %v1875
    %v2014 = vpop.f32.mrf.mxu0
    %v2015 = vadd.f32 %v1854, %v2014
    %v2016 = vpop.f32.mrf.mxu0
    %v2017 = vpop.f32.mrf.mxu0
    %v2018 = vadd.f32 %v1854, %v2017
    %v2019 = vpop.f32.mrf.mxu0
    %2020 = vmatprep.mubr.bf16.mxu0 0
    %2021 = vmatmul.mubr.bf16.gmra.mxu0 %v1878
    %v2022 = vpop.f32.mrf.mxu0
    %v2023 = vadd.f32 %v1854, %v2022
    %v2024 = vpop.f32.mrf.mxu0
    %v2025 = vpop.f32.mrf.mxu0
    %v2026 = vadd.f32 %v1854, %v2025
    %v2027 = vpop.f32.mrf.mxu0
    %2028 = vmatprep.mubr.bf16.mxu0 0
    %2029 = vmatmul.mubr.bf16.gmra.mxu0 %v1881
    %v2030 = vpop.f32.mrf.mxu0
    %v2031 = vadd.f32 %v1854, %v2030
    %v2032 = vpop.f32.mrf.mxu0
    %v2033 = vpop.f32.mrf.mxu0
    %v2034 = vadd.f32 %v1854, %v2033
    %v2035 = vpop.f32.mrf.mxu0
    %2036 = vmatprep.mubr.bf16.mxu0 0
    %2037 = vmatmul.mubr.bf16.gmra.mxu0 %v1884
    %v2038 = vpop.f32.mrf.mxu0
    %v2039 = vadd.f32 %v1854, %v2038
    %v2040 = vpop.f32.mrf.mxu0
    %v2041 = vpop.f32.mrf.mxu0
    %v2042 = vadd.f32 %v1854, %v2041
    %v2043 = vpop.f32.mrf.mxu0
    %2044 = vmatprep.mubr.bf16.mxu0 0
    %2045 = vmatmul.mubr.bf16.gmra.mxu0 %v1887
    %v2046 = vpop.f32.mrf.mxu0
    %v2047 = vadd.f32 %v1854, %v2046
    %v2048 = vpop.f32.mrf.mxu0
    %v2049 = vpop.f32.mrf.mxu0
    %v2050 = vadd.f32 %v1854, %v2049
    %v2051 = vpop.f32.mrf.mxu0
    %2052 = vmatprep.mubr.bf16.mxu0 0
    %2053 = vmatmul.mubr.bf16.gmra.mxu0 %v1890
    %v2054 = vpop.f32.mrf.mxu0
    %v2055 = vadd.f32 %v1854, %v2054
    %v2056 = vpop.f32.mrf.mxu0
    %v2057 = vpop.f32.mrf.mxu0
    %v2058 = vadd.f32 %v1854, %v2057
    %v2059 = vpop.f32.mrf.mxu0
    %2060 = vmatprep.mubr.bf16.mxu0 0
    %2061 = vmatmul.mubr.bf16.gmra.mxu0 %v1893
    %v2062 = vpop.f32.mrf.mxu0
    %v2063 = vadd.f32 %v1854, %v2062
    %v2064 = vpop.f32.mrf.mxu0
    %v2065 = vpop.f32.mrf.mxu0
    %v2066 = vadd.f32 %v1854, %v2065
    %v2067 = vpop.f32.mrf.mxu0
    %2068 = vmatprep.mubr.bf16.mxu0 0
    %2069 = vmatmul.mubr.bf16.gmra.mxu0 %v1896
    %v2070 = vpop.f32.mrf.mxu0
    %v2071 = vadd.f32 %v1854, %v2070
    %v2072 = vpop.f32.mrf.mxu0
    %v2073 = vpop.f32.mrf.mxu0
    %v2074 = vadd.f32 %v1854, %v2073
    %v2075 = vpop.f32.mrf.mxu0
    %2076 = vmatprep.mubr.bf16.mxu0 0
    %2077 = vmatmul.mubr.bf16.gmra.mxu0 %v1899
    %v2078 = vpop.f32.mrf.mxu0
    %v2079 = vadd.f32 %v1854, %v2078
    %v2080 = vpop.f32.mrf.mxu0
    %v2081 = vpop.f32.mrf.mxu0
    %v2082 = vadd.f32 %v1854, %v2081
    %v2083 = vpop.f32.mrf.mxu0
    %2084 = vmatprep.mubr.bf16.mxu0 0
    %2085 = vmatmul.mubr.bf16.gmra.mxu0 %v1902
    %v2086 = vpop.f32.mrf.mxu0
    %v2087 = vadd.f32 %v1854, %v2086
    %v2088 = vpop.f32.mrf.mxu0
    %v2089 = vpop.f32.mrf.mxu0
    %v2090 = vadd.f32 %v1854, %v2089
    %v2091 = vpop.f32.mrf.mxu0
    %2092 = vmatprep.mubr.bf16.mxu0 0
    %2093 = vmatmul.mubr.bf16.gmra.mxu0 %v1905
    %v2094 = vpop.f32.mrf.mxu0
    %v2095 = vadd.f32 %v1854, %v2094
    %v2096 = vpop.f32.mrf.mxu0
    %v2097 = vpop.f32.mrf.mxu0
    %v2098 = vadd.f32 %v1854, %v2097
    %v2099 = vpop.f32.mrf.mxu0
    %2100 = vmatprep.mubr.bf16.mxu0 0
    %2101 = vmatmul.mubr.bf16.gmra.mxu0 %v1908
    %v2102 = vpop.f32.mrf.mxu0
    %v2103 = vadd.f32 %v1854, %v2102
    %v2104 = vpop.f32.mrf.mxu0
    %v2105 = vpop.f32.mrf.mxu0
    %v2106 = vadd.f32 %v1854, %v2105
    %v2107 = vpop.f32.mrf.mxu0
    %2108 = vmatprep.mubr.bf16.mxu0 0
    %2109 = vmatmul.mubr.bf16.gmra.mxu0 %v1911
    %v2110 = vpop.f32.mrf.mxu0
    %v2111 = vadd.f32 %v1854, %v2110
    %v2112 = vpop.f32.mrf.mxu0
    %v2113 = vpop.f32.mrf.mxu0
    %v2114 = vadd.f32 %v1854, %v2113
    %v2115 = vpop.f32.mrf.mxu0
    %2116 = vmatprep.mubr.bf16.mxu0 0
    %2117 = vmatmul.mubr.bf16.gmra.mxu0 %v1914
    %v2118 = vpop.f32.mrf.mxu0
    %v2119 = vadd.f32 %v1854, %v2118
    %v2120 = vpop.f32.mrf.mxu0
    %v2121 = vpop.f32.mrf.mxu0
    %v2122 = vadd.f32 %v1854, %v2121
    %v2123 = vpop.f32.mrf.mxu0
    %2124 = vmatprep.mubr.bf16.mxu0 0
    %2125 = vmatmul.mubr.bf16.gmra.mxu0 %v1917
    %v2126 = vpop.f32.mrf.mxu0
    %v2127 = vadd.f32 %v1854, %v2126
    %v2128 = vpop.f32.mrf.mxu0
    %v2129 = vpop.f32.mrf.mxu0
    %v2130 = vadd.f32 %v1854, %v2129
    %v2131 = vpop.f32.mrf.mxu0
    %2132 = vmatprep.mubr.bf16.mxu0 0
    %2133 = vmatmul.mubr.bf16.gmra.mxu0 %v1920
    %v2134 = vpop.f32.mrf.mxu0
    %v2135 = vadd.f32 %v1854, %v2134
    %v2136 = vpop.f32.mrf.mxu0
    %v2137 = vpop.f32.mrf.mxu0
    %v2138 = vadd.f32 %v1854, %v2137
    %v2139 = vpop.f32.mrf.mxu0
    %2140 = vmatprep.mubr.bf16.mxu0 0
    %2141 = vmatmul.mubr.bf16.gmra.mxu0 %v1923
    %v2142 = vpop.f32.mrf.mxu0
    %v2143 = vadd.f32 %v1854, %v2142
    %v2144 = vpop.f32.mrf.mxu0
    %v2145 = vpop.f32.mrf.mxu0
    %v2146 = vadd.f32 %v1854, %v2145
    %v2147 = vpop.f32.mrf.mxu0
    %2148 = vmatprep.mubr.bf16.mxu0 0
    %2149 = vmatmul.mubr.bf16.gmra.mxu0 %v1926
    %v2150 = vpop.f32.mrf.mxu0
    %v2151 = vadd.f32 %v1854, %v2150
    %v2152 = vpop.f32.mrf.mxu0
    %v2153 = vpop.f32.mrf.mxu0
    %v2154 = vadd.f32 %v1854, %v2153
    %v2155 = vpop.f32.mrf.mxu0
    %2156 = vmatprep.mubr.bf16.mxu0 0
    %2157 = vmatmul.mubr.bf16.gmra.mxu0 %v1929
    %v2158 = vpop.f32.mrf.mxu0
    %v2159 = vadd.f32 %v1854, %v2158
    %v2160 = vpop.f32.mrf.mxu0
    %v2161 = vpop.f32.mrf.mxu0
    %v2162 = vadd.f32 %v1854, %v2161
    %v2163 = vpop.f32.mrf.mxu0
    %2164 = vmatprep.mubr.bf16.mxu0 0
    %2165 = vmatmul.mubr.bf16.gmra.mxu0 %v1932
    %v2166 = vpop.f32.mrf.mxu0
    %v2167 = vadd.f32 %v1854, %v2166
    %v2168 = vpop.f32.mrf.mxu0
    %v2169 = vpop.f32.mrf.mxu0
    %v2170 = vadd.f32 %v1854, %v2169
    %v2171 = vpop.f32.mrf.mxu0
    %2172 = vmatprep.mubr.bf16.mxu0 0
    %2173 = vmatmul.mubr.bf16.gmra.mxu0 %v1935
    %v2174 = vpop.f32.mrf.mxu0
    %v2175 = vadd.f32 %v1854, %v2174
    %v2176 = vpop.f32.mrf.mxu0
    %v2177 = vpop.f32.mrf.mxu0
    %v2178 = vadd.f32 %v1854, %v2177
    %v2179 = vpop.f32.mrf.mxu0
    %2180 = vmatprep.mubr.bf16.mxu0 0
    %2181 = vmatmul.mubr.bf16.gmra.mxu0 %v1938
    %v2182 = vpop.f32.mrf.mxu0
    %v2183 = vadd.f32 %v1854, %v2182
    %v2184 = vpop.f32.mrf.mxu0
    %v2185 = vpop.f32.mrf.mxu0
    %v2186 = vadd.f32 %v1854, %v2185
    %v2187 = vpop.f32.mrf.mxu0
    %2188 = vmatprep.mubr.bf16.mxu0 0
    %2189 = vmatmul.mubr.bf16.gmra.mxu0 %v1941
    %v2190 = vpop.f32.mrf.mxu0
    %v2191 = vadd.f32 %v1854, %v2190
    %v2192 = vpop.f32.mrf.mxu0
    %v2193 = vpop.f32.mrf.mxu0
    %v2194 = vadd.f32 %v1854, %v2193
    %v2195 = vpop.f32.mrf.mxu0
    %2196 = vmatprep.mubr.bf16.mxu0 0
    %2197 = vmatmul.mubr.bf16.gmra.mxu0 %v1944
    %v2198 = vpop.f32.mrf.mxu0
    %v2199 = vadd.f32 %v1854, %v2198
    %v2200 = vpop.f32.mrf.mxu0
    %v2201 = vpop.f32.mrf.mxu0
    %v2202 = vadd.f32 %v1854, %v2201
    %v2203 = vpop.f32.mrf.mxu0
    %2204 = vmatprep.mubr.bf16.mxu0 0
    %2205 = vmatmul.mubr.bf16.gmra.mxu0 %v1947
    %v2206 = vpop.f32.mrf.mxu0
    %v2207 = vadd.f32 %v1854, %v2206
    %v2208 = vpop.f32.mrf.mxu0
    %v2209 = vpop.f32.mrf.mxu0
    %v2210 = vadd.f32 %v1854, %v2209
    %v2211 = vpop.f32.mrf.mxu0
    %2212 = vmatprep.mubr.bf16.mxu0 0
    %2213 = vmatmul.mubr.bf16.gmra.mxu0 %v1950
    %v2214 = vpop.f32.mrf.mxu0
    %v2215 = vadd.f32 %v1854, %v2214
    %v2216 = vpop.f32.mrf.mxu0
    %v2217 = vpop.f32.mrf.mxu0
    %v2218 = vadd.f32 %v1854, %v2217
    %v2219 = vpop.f32.mrf.mxu0
    %2220 = vmatprep.mubr.bf16.mxu0 0
    %2221 = vmatmul.mubr.bf16.gmra.mxu0 %v1953
    %v2222 = vpop.f32.mrf.mxu0
    %v2223 = vadd.f32 %v1854, %v2222
    %v2224 = vpop.f32.mrf.mxu0
    %v2225 = vpop.f32.mrf.mxu0
    %v2226 = vadd.f32 %v1854, %v2225
    %v2227 = vpop.f32.mrf.mxu0
    %2228 = vmatprep.mubr.bf16.mxu0 0
    %2229 = vmatmul.mubr.bf16.gmra.mxu0 %v1956
    %v2230 = vpop.f32.mrf.mxu0
    %v2231 = vadd.f32 %v1854, %v2230
    %v2232 = vpop.f32.mrf.mxu0
    %v2233 = vpop.f32.mrf.mxu0
    %v2234 = vadd.f32 %v1854, %v2233
    %v2235 = vpop.f32.mrf.mxu0
    %2236 = vmatprep.mubr.bf16.mxu0 0
    %2237 = vmatmul.mubr.bf16.gmra.mxu0 %v1959
    %v2238 = vpop.f32.mrf.mxu0
    %v2239 = vadd.f32 %v1854, %v2238
    %v2240 = vpop.f32.mrf.mxu0
    %v2241 = vpop.f32.mrf.mxu0
    %v2242 = vadd.f32 %v1854, %v2241
    %v2243 = vpop.f32.mrf.mxu0
    %2244 = vmatprep.mubr.bf16.mxu0 0
    %2245 = vmatmul.mubr.bf16.gmra.mxu0 %v1962
    %v2246 = vpop.f32.mrf.mxu0
    %v2247 = vadd.f32 %v1854, %v2246
    %v2248 = vpop.f32.mrf.mxu0
    %v2249 = vpop.f32.mrf.mxu0
    %v2250 = vadd.f32 %v1854, %v2249
    %v2251 = vpop.f32.mrf.mxu0
    %2252 = vdwg.mxu0
    %v2253 = vpack.c.bf16 %v2002, %v1999
    %v2254 = vpack.c.bf16 %v2010, %v2007
    %v2255 = vpack.c.bf16 %v2018, %v2015
    %v2256 = vpack.c.bf16 %v2026, %v2023
    %v2257 = vpack.c.bf16 %v2034, %v2031
    %v2258 = vpack.c.bf16 %v2042, %v2039
    %v2259 = vpack.c.bf16 %v2050, %v2047
    %v2260 = vpack.c.bf16 %v2058, %v2055
    %v2261 = vpack.c.bf16 %v2066, %v2063
    %v2262 = vpack.c.bf16 %v2074, %v2071
    %v2263 = vpack.c.bf16 %v2082, %v2079
    %v2264 = vpack.c.bf16 %v2090, %v2087
    %v2265 = vpack.c.bf16 %v2098, %v2095
    %v2266 = vpack.c.bf16 %v2106, %v2103
    %v2267 = vpack.c.bf16 %v2114, %v2111
    %v2268 = vpack.c.bf16 %v2122, %v2119
    %v2269 = vpack.c.bf16 %v2130, %v2127
    %v2270 = vpack.c.bf16 %v2138, %v2135
    %v2271 = vpack.c.bf16 %v2146, %v2143
    %v2272 = vpack.c.bf16 %v2154, %v2151
    %v2273 = vpack.c.bf16 %v2162, %v2159
    %v2274 = vpack.c.bf16 %v2170, %v2167
    %v2275 = vpack.c.bf16 %v2178, %v2175
    %v2276 = vpack.c.bf16 %v2186, %v2183
    %v2277 = vpack.c.bf16 %v2194, %v2191
    %v2278 = vpack.c.bf16 %v2202, %v2199
    %v2279 = vpack.c.bf16 %v2210, %v2207
    %v2280 = vpack.c.bf16 %v2218, %v2215
    %v2281 = vpack.c.bf16 %v2226, %v2223
    %v2282 = vpack.c.bf16 %v2234, %v2231
    %v2283 = vpack.c.bf16 %v2242, %v2239
    %v2284 = vpack.c.bf16 %v2250, %v2247
    %v2317 = vunpack.c.l.b16 %v2253
    %v2318 = vunpack.c.h.b16 %v2253
    %v2319 = vunpack.c.l.b16 %v2254
    %v2320 = vunpack.c.h.b16 %v2254
    %v2321 = vunpack.c.l.b16 %v2255
    %v2322 = vunpack.c.h.b16 %v2255
    %v2323 = vunpack.c.l.b16 %v2256
    %v2324 = vunpack.c.h.b16 %v2256
    %v2325 = vunpack.c.l.b16 %v2257
    %v2326 = vunpack.c.h.b16 %v2257
    %v2327 = vunpack.c.l.b16 %v2258
    %v2328 = vunpack.c.h.b16 %v2258
    %v2329 = vunpack.c.l.b16 %v2259
    %v2330 = vunpack.c.h.b16 %v2259
    %v2331 = vunpack.c.l.b16 %v2260
    %v2332 = vunpack.c.h.b16 %v2260
    %v2333 = vunpack.c.l.b16 %v2261
    %v2334 = vunpack.c.h.b16 %v2261
    %v2335 = vunpack.c.l.b16 %v2262
    %v2336 = vunpack.c.h.b16 %v2262
    %v2337 = vunpack.c.l.b16 %v2263
    %v2338 = vunpack.c.h.b16 %v2263
    %v2339 = vunpack.c.l.b16 %v2264
    %v2340 = vunpack.c.h.b16 %v2264
    %v2341 = vunpack.c.l.b16 %v2265
    %v2342 = vunpack.c.h.b16 %v2265
    %v2343 = vunpack.c.l.b16 %v2266
    %v2344 = vunpack.c.h.b16 %v2266
    %v2345 = vunpack.c.l.b16 %v2267
    %v2346 = vunpack.c.h.b16 %v2267
    %v2347 = vunpack.c.l.b16 %v2268
    %v2348 = vunpack.c.h.b16 %v2268
    %v2349 = vunpack.c.l.b16 %v2269
    %v2350 = vunpack.c.h.b16 %v2269
    %v2351 = vunpack.c.l.b16 %v2270
    %v2352 = vunpack.c.h.b16 %v2270
    %v2353 = vunpack.c.l.b16 %v2271
    %v2354 = vunpack.c.h.b16 %v2271
    %v2355 = vunpack.c.l.b16 %v2272
    %v2356 = vunpack.c.h.b16 %v2272
    %v2357 = vunpack.c.l.b16 %v2273
    %v2358 = vunpack.c.h.b16 %v2273
    %v2359 = vunpack.c.l.b16 %v2274
    %v2360 = vunpack.c.h.b16 %v2274
    %v2361 = vunpack.c.l.b16 %v2275
    %v2362 = vunpack.c.h.b16 %v2275
    %v2363 = vunpack.c.l.b16 %v2276
    %v2364 = vunpack.c.h.b16 %v2276
    %v2365 = vunpack.c.l.b16 %v2277
    %v2366 = vunpack.c.h.b16 %v2277
    %v2367 = vunpack.c.l.b16 %v2278
    %v2368 = vunpack.c.h.b16 %v2278
    %v2369 = vunpack.c.l.b16 %v2279
    %v2370 = vunpack.c.h.b16 %v2279
    %v2371 = vunpack.c.l.b16 %v2280
    %v2372 = vunpack.c.h.b16 %v2280
    %v2373 = vunpack.c.l.b16 %v2281
    %v2374 = vunpack.c.h.b16 %v2281
    %v2375 = vunpack.c.l.b16 %v2282
    %v2376 = vunpack.c.h.b16 %v2282
    %v2377 = vunpack.c.l.b16 %v2283
    %v2378 = vunpack.c.h.b16 %v2283
    %v2379 = vunpack.c.l.b16 %v2284
    %v2380 = vunpack.c.h.b16 %v2284
    %v2381 = vpack.c.b16 %v2317, %v2317
    %v2382 = vpack.c.b16 %v2318, %v2318
    %v2383 = vpack.c.b16 %v2319, %v2319
    %v2384 = vpack.c.b16 %v2320, %v2320
    %v2385 = vpack.c.b16 %v2321, %v2321
    %v2386 = vpack.c.b16 %v2322, %v2322
    %v2387 = vpack.c.b16 %v2323, %v2323
    %v2388 = vpack.c.b16 %v2324, %v2324
    %v2389 = vpack.c.b16 %v2325, %v2325
    %v2390 = vpack.c.b16 %v2326, %v2326
    %v2391 = vpack.c.b16 %v2327, %v2327
    %v2392 = vpack.c.b16 %v2328, %v2328
    %v2393 = vpack.c.b16 %v2329, %v2329
    %v2394 = vpack.c.b16 %v2330, %v2330
    %v2395 = vpack.c.b16 %v2331, %v2331
    %v2396 = vpack.c.b16 %v2332, %v2332
    %v2397 = vpack.c.b16 %v2333, %v2333
    %v2398 = vpack.c.b16 %v2334, %v2334
    %v2399 = vpack.c.b16 %v2335, %v2335
    %v2400 = vpack.c.b16 %v2336, %v2336
    %v2401 = vpack.c.b16 %v2337, %v2337
    %v2402 = vpack.c.b16 %v2338, %v2338
    %v2403 = vpack.c.b16 %v2339, %v2339
    %v2404 = vpack.c.b16 %v2340, %v2340
    %v2405 = vpack.c.b16 %v2341, %v2341
    %v2406 = vpack.c.b16 %v2342, %v2342
    %v2407 = vpack.c.b16 %v2343, %v2343
    %v2408 = vpack.c.b16 %v2344, %v2344
    %v2409 = vpack.c.b16 %v2345, %v2345
    %v2410 = vpack.c.b16 %v2346, %v2346
    %v2411 = vpack.c.b16 %v2347, %v2347
    %v2412 = vpack.c.b16 %v2348, %v2348
    %v2413 = vpack.c.b16 %v2349, %v2349
    %v2414 = vpack.c.b16 %v2350, %v2350
    %v2415 = vpack.c.b16 %v2351, %v2351
    %v2416 = vpack.c.b16 %v2352, %v2352
    %v2417 = vpack.c.b16 %v2353, %v2353
    %v2418 = vpack.c.b16 %v2354, %v2354
    %v2419 = vpack.c.b16 %v2355, %v2355
    %v2420 = vpack.c.b16 %v2356, %v2356
    %v2421 = vpack.c.b16 %v2357, %v2357
    %v2422 = vpack.c.b16 %v2358, %v2358
    %v2423 = vpack.c.b16 %v2359, %v2359
    %v2424 = vpack.c.b16 %v2360, %v2360
    %v2425 = vpack.c.b16 %v2361, %v2361
    %v2426 = vpack.c.b16 %v2362, %v2362
    %v2427 = vpack.c.b16 %v2363, %v2363
    %v2428 = vpack.c.b16 %v2364, %v2364
    %v2429 = vpack.c.b16 %v2365, %v2365
    %v2430 = vpack.c.b16 %v2366, %v2366
    %v2431 = vpack.c.b16 %v2367, %v2367
    %v2432 = vpack.c.b16 %v2368, %v2368
    %v2433 = vpack.c.b16 %v2369, %v2369
    %v2434 = vpack.c.b16 %v2370, %v2370
    %v2435 = vpack.c.b16 %v2371, %v2371
    %v2436 = vpack.c.b16 %v2372, %v2372
    %v2437 = vpack.c.b16 %v2373, %v2373
    %v2438 = vpack.c.b16 %v2374, %v2374
    %v2439 = vpack.c.b16 %v2375, %v2375
    %v2440 = vpack.c.b16 %v2376, %v2376
    %v2441 = vpack.c.b16 %v2377, %v2377
    %v2442 = vpack.c.b16 %v2378, %v2378
    %v2443 = vpack.c.b16 %v2379, %v2379
    %v2444 = vpack.c.b16 %v2380, %v2380
    %2509 = vst [vmem:[#allocation2] sm:$0xf] %v2381
    %2510 = vst [vmem:[#allocation2 + $0x4] sm:$0xf] %v2382
    %2511 = vst [vmem:[#allocation2 + $0x8] sm:$0xf] %v2383
    %2512 = vst [vmem:[#allocation2 + $0xc] sm:$0xf] %v2384
    %2513 = vst [vmem:[#allocation2 + $0x10] sm:$0xf] %v2385
    %2514 = vst [vmem:[#allocation2 + $0x14] sm:$0xf] %v2386
    %2515 = vst [vmem:[#allocation2 + $0x18] sm:$0xf] %v2387
    %2516 = vst [vmem:[#allocation2 + $0x1c] sm:$0xf] %v2388
    %2517 = vst [vmem:[#allocation2 + $0x20] sm:$0xf] %v2389
    %2518 = vst [vmem:[#allocation2 + $0x24] sm:$0xf] %v2390
    %2519 = vst [vmem:[#allocation2 + $0x28] sm:$0xf] %v2391
    %2520 = vst [vmem:[#allocation2 + $0x2c] sm:$0xf] %v2392
    %2521 = vst [vmem:[#allocation2 + $0x30] sm:$0xf] %v2393
    %2522 = vst [vmem:[#allocation2 + $0x34] sm:$0xf] %v2394
    %2523 = vst [vmem:[#allocation2 + $0x38] sm:$0xf] %v2395
    %2524 = vst [vmem:[#allocation2 + $0x3c] sm:$0xf] %v2396
    %2525 = vst [vmem:[#allocation2 + $0x40] sm:$0xf] %v2397
    %2526 = vst [vmem:[#allocation2 + $0x44] sm:$0xf] %v2398
    %2527 = vst [vmem:[#allocation2 + $0x48] sm:$0xf] %v2399
    %2528 = vst [vmem:[#allocation2 + $0x4c] sm:$0xf] %v2400
    %2529 = vst [vmem:[#allocation2 + $0x50] sm:$0xf] %v2401
    %2530 = vst [vmem:[#allocation2 + $0x54] sm:$0xf] %v2402
    %2531 = vst [vmem:[#allocation2 + $0x58] sm:$0xf] %v2403
    %2532 = vst [vmem:[#allocation2 + $0x5c] sm:$0xf] %v2404
    %2533 = vst [vmem:[#allocation2 + $0x60] sm:$0xf] %v2405
    %2534 = vst [vmem:[#allocation2 + $0x64] sm:$0xf] %v2406
    %2535 = vst [vmem:[#allocation2 + $0x68] sm:$0xf] %v2407
    %2536 = vst [vmem:[#allocation2 + $0x6c] sm:$0xf] %v2408
    %2537 = vst [vmem:[#allocation2 + $0x70] sm:$0xf] %v2409
    %2538 = vst [vmem:[#allocation2 + $0x74] sm:$0xf] %v2410
    %2539 = vst [vmem:[#allocation2 + $0x78] sm:$0xf] %v2411
    %2540 = vst [vmem:[#allocation2 + $0x7c] sm:$0xf] %v2412
    %2541 = vst [vmem:[#allocation2 + $0x80] sm:$0xf] %v2413
    %2542 = vst [vmem:[#allocation2 + $0x84] sm:$0xf] %v2414
    %2543 = vst [vmem:[#allocation2 + $0x88] sm:$0xf] %v2415
    %2544 = vst [vmem:[#allocation2 + $0x8c] sm:$0xf] %v2416
    %2545 = vst [vmem:[#allocation2 + $0x90] sm:$0xf] %v2417
    %2546 = vst [vmem:[#allocation2 + $0x94] sm:$0xf] %v2418
    %2547 = vst [vmem:[#allocation2 + $0x98] sm:$0xf] %v2419
    %2548 = vst [vmem:[#allocation2 + $0x9c] sm:$0xf] %v2420
    %2549 = vst [vmem:[#allocation2 + $0xa0] sm:$0xf] %v2421
    %2550 = vst [vmem:[#allocation2 + $0xa4] sm:$0xf] %v2422
    %2551 = vst [vmem:[#allocation2 + $0xa8] sm:$0xf] %v2423
    %2552 = vst [vmem:[#allocation2 + $0xac] sm:$0xf] %v2424
    %2553 = vst [vmem:[#allocation2 + $0xb0] sm:$0xf] %v2425
    %2554 = vst [vmem:[#allocation2 + $0xb4] sm:$0xf] %v2426
    %2555 = vst [vmem:[#allocation2 + $0xb8] sm:$0xf] %v2427
    %2556 = vst [vmem:[#allocation2 + $0xbc] sm:$0xf] %v2428
    %2557 = vst [vmem:[#allocation2 + $0xc0] sm:$0xf] %v2429
    %2558 = vst [vmem:[#allocation2 + $0xc4] sm:$0xf] %v2430
    %2559 = vst [vmem:[#allocation2 + $0xc8] sm:$0xf] %v2431
    %2560 = vst [vmem:[#allocation2 + $0xcc] sm:$0xf] %v2432
    %2561 = vst [vmem:[#allocation2 + $0xd0] sm:$0xf] %v2433
    %2562 = vst [vmem:[#allocation2 + $0xd4] sm:$0xf] %v2434
    %2563 = vst [vmem:[#allocation2 + $0xd8] sm:$0xf] %v2435
    %2564 = vst [vmem:[#allocation2 + $0xdc] sm:$0xf] %v2436
    %2565 = vst [vmem:[#allocation2 + $0xe0] sm:$0xf] %v2437
    %2566 = vst [vmem:[#allocation2 + $0xe4] sm:$0xf] %v2438
    %2567 = vst [vmem:[#allocation2 + $0xe8] sm:$0xf] %v2439
    %2568 = vst [vmem:[#allocation2 + $0xec] sm:$0xf] %v2440
    %2569 = vst [vmem:[#allocation2 + $0xf0] sm:$0xf] %v2441
    %2570 = vst [vmem:[#allocation2 + $0xf4] sm:$0xf] %v2442
    %2571 = vst [vmem:[#allocation2 + $0xf8] sm:$0xf] %v2443
    %2572 = vst [vmem:[#allocation2 + $0xfc] sm:$0xf] %v2444
    // Predicated region
    $region38: #{tpu_custom_call.1} parent=1 // pred_check
      _
    $region39: #{tpu_custom_call.1} parent=1 // pred_check_branch
      %2574 = sbr.rel (0) target = $region41
    $region40: #{tpu_custom_call.1} parent=1 // pred_region
      %s2576 = ssub.s32 4096, 4096
      %2577 = vsyncadd [#allocation3], %s2576
      %s2578 = sshll.u32 [#allocation2], 4
      %s2579 = int_to_ptr.vmem [resolvable:$true] %s2578
      %2584 = dma.vmem_to_hbm [thread:$0]  %s2579, 4096, %s9, [#allocation3], 64, 64, 4
    $region41: #{tpu_custom_call.1} parent=1 // pred_fallthru
      _
    // Predicated region
    $region42: #{tpu_custom_call.1} parent=1 // pred_check
      _
    $region43: #{tpu_custom_call.1} parent=1 // pred_check_branch
      %2586 = sbr.rel (0) target = $region45
    $region44: #{tpu_custom_call.1} parent=1 // pred_region
      %2587 = dma.done [#allocation3], 4096
    $region45: #{tpu_custom_call.1} parent=1 // pred_fallthru
      _
    %2588 = vsyncpa [#allocation3], 1

</llo_original>
